<compile_context>
chip_gen: v5e
topology: v5e:2x2
jax: 0.10.0
libtpu: 0.0.40
codegen_flags: <defaults>
</compile_context>

<pallas_src>
import functools

import jax
import jax.numpy as jnp
import numpy as np
from jax.experimental import pallas as pl
from jax.experimental.pallas import tpu as pltpu

LANE = 128          # lane width (last dim)
SUBLANE_F32 = 8     # f32 sublane packing
SUBLANE_BF16 = 16   # bf16 sublane packing (one bf16 vreg holds 16x128)


def _round_up(x, m):
    return ((x + m - 1) // m) * m


# ---------------------------------------------------------------------------
# Kernel: one grid step = `graphs_per_block` independent graphs.
# ---------------------------------------------------------------------------
def mlp_zinc_kernel(num_layers,
                    h0_ref, n_ref, snorm_ref,
                    w0_ref, b0_ref, ws_ref, bs_ref, gam_ref, bet_ref,
                    r1w_ref, r1b_ref, r2w_ref, r2b_ref,
                    out_ref):
    GPB, Np, _ = h0_ref.shape
    mxu_dtype = w0_ref.dtype                 # f32 or bf16 (weights pre-cast outside)

    n = n_ref[...]                           # (GPB, 1) f32 real node counts per graph
    inv_n2 = 1.0 / n                         # (GPB, 1)
    inv_n3 = inv_n2[:, :, None]              # (GPB, 1, 1)
    snorm = snorm_ref[...]                   # (GPB, Np, 1); 0 on padded node rows

    def mm(a3, w):
        # (GPB, Np, K) x (K, Nout) -> (GPB, Np, Nout), M = GPB*Np rows on the MXU.
        # Cast activations to the weight dtype at the MXU input; accumulate f32.
        k = a3.shape[-1]
        a2 = a3.reshape(GPB * Np, k).astype(mxu_dtype)
        r = jnp.dot(a2, w, preferred_element_type=jnp.float32)
        return r.reshape(GPB, Np, w.shape[-1])

    def bn_relu(h, gamma, beta, eps=1e-5):
        # Fused single-sweep BatchNorm1d (training mode, biased var) + ReLU,
        # computed independently per graph.  Padded rows are exactly 0 (snorm
        # pad = 0), so unmasked sums over Np are exact over the n real rows.
        s1 = jnp.sum(h, axis=1, keepdims=True)        # (GPB, 1, Hp)
        s2 = jnp.sum(h * h, axis=1, keepdims=True)    # (GPB, 1, Hp)
        mu = s1 * inv_n3
        var = s2 * inv_n3 - mu * mu
        scale = gamma * jax.lax.rsqrt(var + eps)
        shift = beta - mu * scale
        return jnp.maximum(h * scale + shift, 0.0)

    # Layer 0: Linear(in_dim, H) + snorm + BN + ReLU
    h = mm(h0_ref[...], w0_ref[...]) + b0_ref[...]
    h = h * snorm                                     # padded rows -> 0
    h = bn_relu(h, gam_ref[0], bet_ref[0])

    # num_layers x (Linear(H, H) + snorm + BN + ReLU)
    for l in range(num_layers):
        h = mm(h, ws_ref[l]) + bs_ref[l]
        h = h * snorm
        h = bn_relu(h, gam_ref[l + 1], bet_ref[l + 1])

    # dgl.mean_nodes per graph: masked sum over real rows / n, then ReLU.
    idx = jax.lax.broadcasted_iota(jnp.int32, (GPB, Np, 1), 1).astype(jnp.float32)
    mask = (idx < n[:, :, None]).astype(jnp.float32)
    hg = jnp.maximum(jnp.sum(h * mask, axis=1) * inv_n2, 0.0)     # (GPB, Hp)

    # regressor1 + ReLU (whole pooled batch in one matmul)
    hg = jnp.maximum(
        jnp.dot(hg.astype(mxu_dtype), r1w_ref[...],
                preferred_element_type=jnp.float32) + r1b_ref[...], 0.0)

    # regressor2 as a VPU multiply + XLU lane reduction (only col 0 of the
    # original (H2, 1) weight is real; it is stored as a (1, H2p) row).
    logit = jnp.sum(hg * r2w_ref[...], axis=-1, keepdims=True) + r2b_ref[...]
    out_ref[...] = jnp.broadcast_to(logit, out_ref.shape)          # lane-dense slab


# ---------------------------------------------------------------------------
# Parameter preparation (padding + weight dtype cast), done once.
# ---------------------------------------------------------------------------
def pad_params_for_tpu(params, *, weight_dtype=jnp.bfloat16):
    """Zero-pad feature dims to 128-lane multiples; cast MXU weights."""
    in_dim, H = params["w0"].shape
    H2 = params["r1w"].shape[1]
    Dp = _round_up(in_dim, LANE)
    Hp = _round_up(H, LANE)
    H2p = _round_up(H2, LANE)

    def pad2(a, rows, cols):
        return jnp.pad(a, ((0, rows - a.shape[0]), (0, cols - a.shape[1])))

    return {
        "embed": pad2(params["embed"], params["embed"].shape[0], Dp).astype(weight_dtype),
        "w0": pad2(params["w0"], Dp, Hp).astype(weight_dtype),
        "b0": pad2(params["b0"], 1, Hp),
        "ws": jnp.pad(params["ws"], ((0, 0), (0, Hp - H), (0, Hp - H))).astype(weight_dtype),
        "bs": jnp.pad(params["bs"], ((0, 0), (0, 0), (0, Hp - H))),
        "gammas": jnp.pad(params["gammas"], ((0, 0), (0, 0), (0, Hp - H))),  # pad gamma=0
        "betas": jnp.pad(params["betas"], ((0, 0), (0, 0), (0, Hp - H))),    # pad beta=0
        "r1w": pad2(params["r1w"], Hp, H2p).astype(weight_dtype),
        "r1b": pad2(params["r1b"], 1, H2p),
        # regressor2 weight as a lane row for the VPU/XLU dot; keep f32 (v5e VPU).
        "r2w_row": pad2(params["r2w"].T, 1, H2p).astype(jnp.float32),
        "r2b": params["r2b"].astype(jnp.float32),                            # (1, 1)
    }


# ---------------------------------------------------------------------------
# Wrapper: batched forward over G graphs with fixed node bucket Np.
# ---------------------------------------------------------------------------
def mlp_zinc_forward(padded_params, x, e, snorm_n, snorm_e, n_nodes, *,
                     num_layers, graphs_per_block=8):
    """Batched forward; each graph is an independent MLPZinc forward pass.

    x:        (G, Np) int32 padded atom-type ids (pad value arbitrary)
    snorm_n:  (G, Np, 1) f32 per-node snorm, 0 on padded node rows
    n_nodes:  (G,) int   real node count per graph
    Returns   (G, 1) f32 logits.  e / snorm_e accepted but unused (as in PyTorch).
    """
    del e, snorm_e
    p = padded_params
    G, Np = x.shape
    GPB = graphs_per_block
    assert GPB % 8 == 0, "graphs_per_block must be a multiple of 8"
    sub = SUBLANE_BF16 if p["w0"].dtype == jnp.bfloat16 else SUBLANE_F32
    assert Np % sub == 0, f"node bucket {Np} must be a multiple of {sub}"

    # Pad the graph batch to a multiple of graphs_per_block (dummy graphs: n=1,
    # snorm=0 -> all-finite, values discarded by the final slice).
    Gp = _round_up(max(G, GPB), GPB)
    x = jnp.pad(x, ((0, Gp - G), (0, 0)))
    snorm = jnp.pad(snorm_n.astype(jnp.float32), ((0, Gp - G), (0, 0), (0, 0)))
    n_f = jnp.pad(n_nodes.astype(jnp.float32), (0, Gp - G),
                  constant_values=1.0).reshape(Gp, 1)

    # Embedding lookup for the whole batch (wrapper gather; one lane-dense slab).
    h0 = jnp.take(p["embed"], x, axis=0)                 # (Gp, Np, Dp), weight dtype
    Dp = h0.shape[-1]
    assert p["ws"].shape[0] == num_layers

    inputs = (h0, n_f, snorm,
              p["w0"], p["b0"], p["ws"], p["bs"], p["gammas"], p["betas"],
              p["r1w"], p["r1b"], p["r2w_row"], p["r2b"])

    def resident(a):
        # Constant index_map -> block DMA'd once, stays VMEM-resident across steps.
        nd = a.ndim
        return pl.BlockSpec(a.shape, lambda g, nd=nd: (0,) * nd)

    in_specs = [
        pl.BlockSpec((GPB, Np, Dp), lambda g: (g, 0, 0)),   # h0 (streamed per block)
        pl.BlockSpec((GPB, 1), lambda g: (g, 0)),           # n_real per graph
        pl.BlockSpec((GPB, Np, 1), lambda g: (g, 0, 0)),    # snorm per node
    ] + [resident(a) for a in inputs[3:]]
    out_specs = pl.BlockSpec((GPB, LANE), lambda g: (g, 0))

    # VMEM budget: resident params + double-buffered streamed blocks, with
    # headroom, capped below the v7x 64 MiB physical ceiling.
    def nbytes(a):
        return int(np.prod(a.shape)) * a.dtype.itemsize
    per_block = (GPB * Np * Dp * h0.dtype.itemsize + GPB * Np * 4
                 + GPB * 4 + GPB * LANE * 4)
    need = 2 * per_block + 2 * sum(nbytes(a) for a in inputs[3:])
    vmem_budget = int(min(max(2 * need, 16 << 20), 48 << 20))

    kernel = functools.partial(mlp_zinc_kernel, num_layers)
    out_pad = pl.pallas_call(
        kernel,
        out_shape=jax.ShapeDtypeStruct((Gp, LANE), jnp.float32),
        grid=(Gp // GPB,),
        in_specs=in_specs,
        out_specs=out_specs,
        compiler_params=pltpu.CompilerParams(
            dimension_semantics=("parallel",),      # v7x: 2 TCs split the batch
            vmem_limit_bytes=vmem_budget,
        ),
    )(*inputs)
    # Only column 0 of the lane-dense output slab is the real logit.
    return out_pad[:G, :1]                                   # (G, 1)


# ---------------------------------------------------------------------------
# Pure-JAX single-graph reference (unpadded, f32) for validation.
# ---------------------------------------------------------------------------
def _bn_relu_ref(h, gamma, beta, eps=1e-5):
    mu = jnp.mean(h, axis=0, keepdims=True)
    var = jnp.mean((h - mu) * (h - mu), axis=0, keepdims=True)
    hn = (h - mu) * jax.lax.rsqrt(var + eps)
    return jnp.maximum(hn * gamma + beta, 0.0)


def mlp_zinc_reference(params, x, snorm_n, *, num_layers):
    h = params["embed"][x]
    h = h @ params["w0"] + params["b0"]
    h = h * snorm_n
    h = _bn_relu_ref(h, params["gammas"][0], params["betas"][0])
    for l in range(num_layers):
        h = h @ params["ws"][l] + params["bs"][l]
        h = h * snorm_n
        h = _bn_relu_ref(h, params["gammas"][l + 1], params["betas"][l + 1])
    hg = jnp.maximum(jnp.mean(h, axis=0, keepdims=True), 0.0)
    hg = jnp.maximum(hg @ params["r1w"] + params["r1b"], 0.0)
    return hg @ params["r2w"] + params["r2b"]


def init_params(key, *, in_dim, num_hidden, num_layers, num_atom_type):
    keys = jax.random.split(key, 8)
    H = num_hidden
    scale = 0.1
    return {
        "embed": scale * jax.random.normal(keys[0], (num_atom_type, in_dim), jnp.float32),
        "w0": scale * jax.random.normal(keys[1], (in_dim, H), jnp.float32),
        "b0": scale * jax.random.normal(keys[2], (1, H), jnp.float32),
        "ws": scale * jax.random.normal(keys[3], (num_layers, H, H), jnp.float32),
        "bs": scale * jax.random.normal(keys[4], (num_layers, 1, H), jnp.float32),
        "gammas": jnp.ones((num_layers + 1, 1, H), jnp.float32),   # BN default init
        "betas": jnp.zeros((num_layers + 1, 1, H), jnp.float32),
        "r1w": scale * jax.random.normal(keys[5], (H, H // 2), jnp.float32),
        "r1b": scale * jax.random.normal(keys[6], (1, H // 2), jnp.float32),
        "r2w": scale * jax.random.normal(keys[7], (H // 2, 1), jnp.float32),
        "r2b": jnp.zeros((1, 1), jnp.float32),
    }


if __name__ == "__main__":
    # ZINC-like config; a batch of small graphs with variable node counts.
    num_atom_type = 28
    num_bond_type = 4
    in_dim = 16
    num_hidden = 32
    num_layers = 2

    G = 16      # graphs in the batch
    Np = 16     # node bucket (multiple of 16 -> bf16 sublane packing)
    GPB = 8     # graphs per grid step -> matmul M = GPB*Np = 128 MXU rows

    key = jax.random.PRNGKey(0)
    k_param, k_n, k_x, k_e = jax.random.split(key, 4)

    params = init_params(k_param, in_dim=in_dim, num_hidden=num_hidden,
                         num_layers=num_layers, num_atom_type=num_atom_type)

    n_nodes = jax.random.randint(k_n, (G,), 4, Np + 1)                 # 4..16 nodes
    x = jax.random.randint(k_x, (G, Np), 0, num_atom_type)             # padded ids
    valid = jnp.arange(Np)[None, :] < n_nodes[:, None]
    snorm_n = jnp.where(valid,
                        1.0 / jnp.sqrt(n_nodes[:, None].astype(jnp.float32)),
                        0.0)[..., None]                                 # (G, Np, 1)
    # Edge inputs accepted but unused by the forward (exactly like PyTorch).
    E = 32
    e = jax.random.randint(k_e, (G, E), 0, num_bond_type)
    snorm_e = jnp.full((G, E, 1), 1.0 / jnp.sqrt(float(E)), jnp.float32)

    # --- f32-weight path: validated against the per-graph pure-JAX reference ---
    pp_f32 = pad_params_for_tpu(params, weight_dtype=jnp.float32)
    out_f32 = mlp_zinc_forward(pp_f32, x, e, snorm_n, snorm_e, n_nodes,
                               num_layers=num_layers, graphs_per_block=GPB)
    out_f32 = jax.block_until_ready(out_f32)

    n_host = np.asarray(n_nodes)
    refs = []
    for g in range(G):
        n = int(n_host[g])
        refs.append(mlp_zinc_reference(params, x[g, :n], snorm_n[g, :n],
                                       num_layers=num_layers))
    ref = jnp.concatenate(refs, axis=0)                                 # (G, 1)
    np.testing.assert_allclose(np.asarray(out_f32), np.asarray(ref),
                               rtol=2e-3, atol=2e-4)

    # --- bf16-weight path (default; native MXU dtype, f32 accum/elementwise) ---
    pp_bf16 = pad_params_for_tpu(params, weight_dtype=jnp.bfloat16)
    out_bf16 = mlp_zinc_forward(pp_bf16, x, e, snorm_n, snorm_e, n_nodes,
                                num_layers=num_layers, graphs_per_block=GPB)
    out_bf16 = jax.block_until_ready(out_bf16)
    assert bool(jnp.all(jnp.isfinite(out_bf16)))
    np.testing.assert_allclose(np.asarray(out_bf16), np.asarray(out_f32),
                               rtol=3e-2, atol=3e-2)

    print("KERNEL_OK")
</pallas_src>

<mosaic_0001>
module attributes {stable_mosaic.version = 11 : i64} {
  func.func @mlp_zinc_kernel(%arg0: i32, %arg1: memref<8x16x128xf32, #tpu.memory_space<vmem>>, %arg2: memref<8x1xf32, #tpu.memory_space<vmem>>, %arg3: memref<8x16x1xf32, #tpu.memory_space<vmem>>, %arg4: memref<128x128xf32, #tpu.memory_space<vmem>>, %arg5: memref<1x128xf32, #tpu.memory_space<vmem>>, %arg6: memref<2x128x128xf32, #tpu.memory_space<vmem>>, %arg7: memref<2x1x128xf32, #tpu.memory_space<vmem>>, %arg8: memref<3x1x128xf32, #tpu.memory_space<vmem>>, %arg9: memref<3x1x128xf32, #tpu.memory_space<vmem>>, %arg10: memref<128x128xf32, #tpu.memory_space<vmem>>, %arg11: memref<1x128xf32, #tpu.memory_space<vmem>>, %arg12: memref<1x128xf32, #tpu.memory_space<vmem>>, %arg13: memref<1x1xf32, #tpu.memory_space<vmem>>, %arg14: memref<8x128xf32, #tpu.memory_space<vmem>>) attributes {dimension_semantics = [#tpu.dimension_semantics<parallel>], iteration_bounds = array<i64: 2>, scalar_prefetch = 0 : i64, scratch_operands = 0 : i64, tpu.core_type = #tpu.core_type<tc>, window_params = [{transform_indices = @transform_0, window_bounds = array<i64: 8, 16, 128>}, {transform_indices = @transform_1, window_bounds = array<i64: 8, 1>}, {transform_indices = @transform_2, window_bounds = array<i64: 8, 16, 1>}, {pipeline_mode = #tpu.pipeline_mode<synchronous>, transform_indices = @transform_3, window_bounds = array<i64: 128, 128>}, {pipeline_mode = #tpu.pipeline_mode<synchronous>, transform_indices = @transform_4, window_bounds = array<i64: 1, 128>}, {pipeline_mode = #tpu.pipeline_mode<synchronous>, transform_indices = @transform_5, window_bounds = array<i64: 2, 128, 128>}, {pipeline_mode = #tpu.pipeline_mode<synchronous>, transform_indices = @transform_6, window_bounds = array<i64: 2, 1, 128>}, {pipeline_mode = #tpu.pipeline_mode<synchronous>, transform_indices = @transform_7, window_bounds = array<i64: 3, 1, 128>}, {pipeline_mode = #tpu.pipeline_mode<synchronous>, transform_indices = @transform_8, window_bounds = array<i64: 3, 1, 128>}, {pipeline_mode = #tpu.pipeline_mode<synchronous>, transform_indices = @transform_9, window_bounds = array<i64: 128, 128>}, {pipeline_mode = #tpu.pipeline_mode<synchronous>, transform_indices = @transform_10, window_bounds = array<i64: 1, 128>}, {pipeline_mode = #tpu.pipeline_mode<synchronous>, transform_indices = @transform_11, window_bounds = array<i64: 1, 128>}, {pipeline_mode = #tpu.pipeline_mode<synchronous>, transform_indices = @transform_12, window_bounds = array<i64: 1, 1>}, {transform_indices = @transform_13, window_bounds = array<i64: 8, 128>}]} {
    %c0 = arith.constant 0 : index
    %c0_0 = arith.constant 0 : index
    %0 = vector.load %arg2[%c0, %c0_0] : memref<8x1xf32, #tpu.memory_space<vmem>>, vector<8x1xf32>
    %cst = arith.constant 1.000000e+00 : f32
    %1 = vector.broadcast %cst : f32 to vector<8x1xf32>
    %2 = arith.divf %1, %0 : vector<8x1xf32>
    %3 = vector.shape_cast %2 : vector<8x1xf32> to vector<8x1x1xf32>
    %c0_1 = arith.constant 0 : index
    %c0_2 = arith.constant 0 : index
    %c0_3 = arith.constant 0 : index
    %4 = vector.load %arg3[%c0_1, %c0_2, %c0_3] : memref<8x16x1xf32, #tpu.memory_space<vmem>>, vector<8x16x1xf32>
    %c0_4 = arith.constant 0 : index
    %c0_5 = arith.constant 0 : index
    %c0_6 = arith.constant 0 : index
    %5 = vector.load %arg1[%c0_4, %c0_5, %c0_6] : memref<8x16x128xf32, #tpu.memory_space<vmem>>, vector<8x16x128xf32>
    %c0_7 = arith.constant 0 : index
    %c0_8 = arith.constant 0 : index
    %6 = vector.load %arg4[%c0_7, %c0_8] : memref<128x128xf32, #tpu.memory_space<vmem>>, vector<128x128xf32>
    %7 = vector.shape_cast %5 : vector<8x16x128xf32> to vector<128x128xf32>
    %cst_9 = arith.constant dense<0.000000e+00> : vector<128x128xf32>
    %8 = tpu.matmul %7, %6, %cst_9 {dimension_numbers = #tpu.dot_dimension_numbers<[1], [0], [0], [1], [0, 0, 1, 1], [], []>} : vector<128x128xf32>, vector<128x128xf32>, vector<128x128xf32> -> vector<128x128xf32>
    %9 = vector.shape_cast %8 : vector<128x128xf32> to vector<8x16x128xf32>
    %c0_10 = arith.constant 0 : index
    %c0_11 = arith.constant 0 : index
    %10 = vector.load %arg5[%c0_10, %c0_11] : memref<1x128xf32, #tpu.memory_space<vmem>>, vector<1x128xf32>
    %11 = vector.shape_cast %10 : vector<1x128xf32> to vector<1x1x128xf32>
    %12 = vector.broadcast %11 : vector<1x1x128xf32> to vector<8x16x128xf32>
    %13 = arith.addf %9, %12 : vector<8x16x128xf32>
    %14 = vector.broadcast %4 : vector<8x16x1xf32> to vector<8x16x128xf32>
    %15 = arith.mulf %13, %14 : vector<8x16x128xf32>
    %c0_12 = arith.constant 0 : index
    %c0_13 = arith.constant 0 : index
    %c0_14 = arith.constant 0 : index
    %16 = vector.load %arg8[%c0_12, %c0_13, %c0_14] : memref<3x1x128xf32, #tpu.memory_space<vmem>>, vector<1x1x128xf32>
    %17 = vector.shape_cast %16 : vector<1x1x128xf32> to vector<1x128xf32>
    %c0_15 = arith.constant 0 : index
    %c0_16 = arith.constant 0 : index
    %c0_17 = arith.constant 0 : index
    %18 = vector.load %arg9[%c0_15, %c0_16, %c0_17] : memref<3x1x128xf32, #tpu.memory_space<vmem>>, vector<1x1x128xf32>
    %19 = vector.shape_cast %18 : vector<1x1x128xf32> to vector<1x128xf32>
    %cst_18 = arith.constant dense<0.000000e+00> : vector<8x128xf32>
    %20 = vector.multi_reduction <add>, %15, %cst_18 [1] : vector<8x16x128xf32> to vector<8x128xf32>
    %21 = vector.shape_cast %20 : vector<8x128xf32> to vector<8x1x128xf32>
    %22 = arith.mulf %15, %15 : vector<8x16x128xf32>
    %cst_19 = arith.constant dense<0.000000e+00> : vector<8x128xf32>
    %23 = vector.multi_reduction <add>, %22, %cst_19 [1] : vector<8x16x128xf32> to vector<8x128xf32>
    %24 = vector.shape_cast %23 : vector<8x128xf32> to vector<8x1x128xf32>
    %25 = vector.broadcast %3 : vector<8x1x1xf32> to vector<8x1x128xf32>
    %26 = arith.mulf %21, %25 : vector<8x1x128xf32>
    %27 = vector.broadcast %3 : vector<8x1x1xf32> to vector<8x1x128xf32>
    %28 = arith.mulf %24, %27 : vector<8x1x128xf32>
    %29 = arith.mulf %26, %26 : vector<8x1x128xf32>
    %30 = arith.subf %28, %29 : vector<8x1x128xf32>
    %cst_20 = arith.constant 9.99999974E-6 : f32
    %31 = vector.broadcast %cst_20 : f32 to vector<8x1x128xf32>
    %32 = arith.addf %30, %31 : vector<8x1x128xf32>
    %33 = math.rsqrt %32 : vector<8x1x128xf32>
    %34 = vector.shape_cast %17 : vector<1x128xf32> to vector<1x1x128xf32>
    %35 = vector.broadcast %34 : vector<1x1x128xf32> to vector<8x1x128xf32>
    %36 = arith.mulf %35, %33 : vector<8x1x128xf32>
    %37 = arith.mulf %26, %36 : vector<8x1x128xf32>
    %38 = vector.shape_cast %19 : vector<1x128xf32> to vector<1x1x128xf32>
    %39 = vector.broadcast %38 : vector<1x1x128xf32> to vector<8x1x128xf32>
    %40 = arith.subf %39, %37 : vector<8x1x128xf32>
    %41 = vector.broadcast %36 : vector<8x1x128xf32> to vector<8x16x128xf32>
    %42 = arith.mulf %15, %41 : vector<8x16x128xf32>
    %43 = vector.broadcast %40 : vector<8x1x128xf32> to vector<8x16x128xf32>
    %44 = arith.addf %42, %43 : vector<8x16x128xf32>
    %cst_21 = arith.constant 0.000000e+00 : f32
    %45 = vector.broadcast %cst_21 : f32 to vector<8x16x128xf32>
    %46 = arith.maximumf %44, %45 : vector<8x16x128xf32>
    %c0_22 = arith.constant 0 : index
    %c0_23 = arith.constant 0 : index
    %c0_24 = arith.constant 0 : index
    %47 = vector.load %arg6[%c0_22, %c0_23, %c0_24] : memref<2x128x128xf32, #tpu.memory_space<vmem>>, vector<1x128x128xf32>
    %48 = vector.shape_cast %47 : vector<1x128x128xf32> to vector<128x128xf32>
    %49 = vector.shape_cast %46 : vector<8x16x128xf32> to vector<128x128xf32>
    %cst_25 = arith.constant dense<0.000000e+00> : vector<128x128xf32>
    %50 = tpu.matmul %49, %48, %cst_25 {dimension_numbers = #tpu.dot_dimension_numbers<[1], [0], [0], [1], [0, 0, 1, 1], [], []>} : vector<128x128xf32>, vector<128x128xf32>, vector<128x128xf32> -> vector<128x128xf32>
    %51 = vector.shape_cast %50 : vector<128x128xf32> to vector<8x16x128xf32>
    %c0_26 = arith.constant 0 : index
    %c0_27 = arith.constant 0 : index
    %c0_28 = arith.constant 0 : index
    %52 = vector.load %arg7[%c0_26, %c0_27, %c0_28] : memref<2x1x128xf32, #tpu.memory_space<vmem>>, vector<1x1x128xf32>
    %53 = vector.shape_cast %52 : vector<1x1x128xf32> to vector<1x128xf32>
    %54 = vector.shape_cast %53 : vector<1x128xf32> to vector<1x1x128xf32>
    %55 = vector.broadcast %54 : vector<1x1x128xf32> to vector<8x16x128xf32>
    %56 = arith.addf %51, %55 : vector<8x16x128xf32>
    %57 = vector.broadcast %4 : vector<8x16x1xf32> to vector<8x16x128xf32>
    %58 = arith.mulf %56, %57 : vector<8x16x128xf32>
    %c1 = arith.constant 1 : index
    %c0_29 = arith.constant 0 : index
    %c0_30 = arith.constant 0 : index
    %59 = vector.load %arg8[%c1, %c0_29, %c0_30] : memref<3x1x128xf32, #tpu.memory_space<vmem>>, vector<1x1x128xf32>
    %60 = vector.shape_cast %59 : vector<1x1x128xf32> to vector<1x128xf32>
    %c1_31 = arith.constant 1 : index
    %c0_32 = arith.constant 0 : index
    %c0_33 = arith.constant 0 : index
    %61 = vector.load %arg9[%c1_31, %c0_32, %c0_33] : memref<3x1x128xf32, #tpu.memory_space<vmem>>, vector<1x1x128xf32>
    %62 = vector.shape_cast %61 : vector<1x1x128xf32> to vector<1x128xf32>
    %cst_34 = arith.constant dense<0.000000e+00> : vector<8x128xf32>
    %63 = vector.multi_reduction <add>, %58, %cst_34 [1] : vector<8x16x128xf32> to vector<8x128xf32>
    %64 = vector.shape_cast %63 : vector<8x128xf32> to vector<8x1x128xf32>
    %65 = arith.mulf %58, %58 : vector<8x16x128xf32>
    %cst_35 = arith.constant dense<0.000000e+00> : vector<8x128xf32>
    %66 = vector.multi_reduction <add>, %65, %cst_35 [1] : vector<8x16x128xf32> to vector<8x128xf32>
    %67 = vector.shape_cast %66 : vector<8x128xf32> to vector<8x1x128xf32>
    %68 = vector.broadcast %3 : vector<8x1x1xf32> to vector<8x1x128xf32>
    %69 = arith.mulf %64, %68 : vector<8x1x128xf32>
    %70 = vector.broadcast %3 : vector<8x1x1xf32> to vector<8x1x128xf32>
    %71 = arith.mulf %67, %70 : vector<8x1x128xf32>
    %72 = arith.mulf %69, %69 : vector<8x1x128xf32>
    %73 = arith.subf %71, %72 : vector<8x1x128xf32>
    %cst_36 = arith.constant 9.99999974E-6 : f32
    %74 = vector.broadcast %cst_36 : f32 to vector<8x1x128xf32>
    %75 = arith.addf %73, %74 : vector<8x1x128xf32>
    %76 = math.rsqrt %75 : vector<8x1x128xf32>
    %77 = vector.shape_cast %60 : vector<1x128xf32> to vector<1x1x128xf32>
    %78 = vector.broadcast %77 : vector<1x1x128xf32> to vector<8x1x128xf32>
    %79 = arith.mulf %78, %76 : vector<8x1x128xf32>
    %80 = arith.mulf %69, %79 : vector<8x1x128xf32>
    %81 = vector.shape_cast %62 : vector<1x128xf32> to vector<1x1x128xf32>
    %82 = vector.broadcast %81 : vector<1x1x128xf32> to vector<8x1x128xf32>
    %83 = arith.subf %82, %80 : vector<8x1x128xf32>
    %84 = vector.broadcast %79 : vector<8x1x128xf32> to vector<8x16x128xf32>
    %85 = arith.mulf %58, %84 : vector<8x16x128xf32>
    %86 = vector.broadcast %83 : vector<8x1x128xf32> to vector<8x16x128xf32>
    %87 = arith.addf %85, %86 : vector<8x16x128xf32>
    %cst_37 = arith.constant 0.000000e+00 : f32
    %88 = vector.broadcast %cst_37 : f32 to vector<8x16x128xf32>
    %89 = arith.maximumf %87, %88 : vector<8x16x128xf32>
    %c1_38 = arith.constant 1 : index
    %c0_39 = arith.constant 0 : index
    %c0_40 = arith.constant 0 : index
    %90 = vector.load %arg6[%c1_38, %c0_39, %c0_40] : memref<2x128x128xf32, #tpu.memory_space<vmem>>, vector<1x128x128xf32>
    %91 = vector.shape_cast %90 : vector<1x128x128xf32> to vector<128x128xf32>
    %92 = vector.shape_cast %89 : vector<8x16x128xf32> to vector<128x128xf32>
    %cst_41 = arith.constant dense<0.000000e+00> : vector<128x128xf32>
    %93 = tpu.matmul %92, %91, %cst_41 {dimension_numbers = #tpu.dot_dimension_numbers<[1], [0], [0], [1], [0, 0, 1, 1], [], []>} : vector<128x128xf32>, vector<128x128xf32>, vector<128x128xf32> -> vector<128x128xf32>
    %94 = vector.shape_cast %93 : vector<128x128xf32> to vector<8x16x128xf32>
    %c1_42 = arith.constant 1 : index
    %c0_43 = arith.constant 0 : index
    %c0_44 = arith.constant 0 : index
    %95 = vector.load %arg7[%c1_42, %c0_43, %c0_44] : memref<2x1x128xf32, #tpu.memory_space<vmem>>, vector<1x1x128xf32>
    %96 = vector.shape_cast %95 : vector<1x1x128xf32> to vector<1x128xf32>
    %97 = vector.shape_cast %96 : vector<1x128xf32> to vector<1x1x128xf32>
    %98 = vector.broadcast %97 : vector<1x1x128xf32> to vector<8x16x128xf32>
    %99 = arith.addf %94, %98 : vector<8x16x128xf32>
    %100 = vector.broadcast %4 : vector<8x16x1xf32> to vector<8x16x128xf32>
    %101 = arith.mulf %99, %100 : vector<8x16x128xf32>
    %c2 = arith.constant 2 : index
    %c0_45 = arith.constant 0 : index
    %c0_46 = arith.constant 0 : index
    %102 = vector.load %arg8[%c2, %c0_45, %c0_46] : memref<3x1x128xf32, #tpu.memory_space<vmem>>, vector<1x1x128xf32>
    %103 = vector.shape_cast %102 : vector<1x1x128xf32> to vector<1x128xf32>
    %c2_47 = arith.constant 2 : index
    %c0_48 = arith.constant 0 : index
    %c0_49 = arith.constant 0 : index
    %104 = vector.load %arg9[%c2_47, %c0_48, %c0_49] : memref<3x1x128xf32, #tpu.memory_space<vmem>>, vector<1x1x128xf32>
    %105 = vector.shape_cast %104 : vector<1x1x128xf32> to vector<1x128xf32>
    %cst_50 = arith.constant dense<0.000000e+00> : vector<8x128xf32>
    %106 = vector.multi_reduction <add>, %101, %cst_50 [1] : vector<8x16x128xf32> to vector<8x128xf32>
    %107 = vector.shape_cast %106 : vector<8x128xf32> to vector<8x1x128xf32>
    %108 = arith.mulf %101, %101 : vector<8x16x128xf32>
    %cst_51 = arith.constant dense<0.000000e+00> : vector<8x128xf32>
    %109 = vector.multi_reduction <add>, %108, %cst_51 [1] : vector<8x16x128xf32> to vector<8x128xf32>
    %110 = vector.shape_cast %109 : vector<8x128xf32> to vector<8x1x128xf32>
    %111 = vector.broadcast %3 : vector<8x1x1xf32> to vector<8x1x128xf32>
    %112 = arith.mulf %107, %111 : vector<8x1x128xf32>
    %113 = vector.broadcast %3 : vector<8x1x1xf32> to vector<8x1x128xf32>
    %114 = arith.mulf %110, %113 : vector<8x1x128xf32>
    %115 = arith.mulf %112, %112 : vector<8x1x128xf32>
    %116 = arith.subf %114, %115 : vector<8x1x128xf32>
    %cst_52 = arith.constant 9.99999974E-6 : f32
    %117 = vector.broadcast %cst_52 : f32 to vector<8x1x128xf32>
    %118 = arith.addf %116, %117 : vector<8x1x128xf32>
    %119 = math.rsqrt %118 : vector<8x1x128xf32>
    %120 = vector.shape_cast %103 : vector<1x128xf32> to vector<1x1x128xf32>
    %121 = vector.broadcast %120 : vector<1x1x128xf32> to vector<8x1x128xf32>
    %122 = arith.mulf %121, %119 : vector<8x1x128xf32>
    %123 = arith.mulf %112, %122 : vector<8x1x128xf32>
    %124 = vector.shape_cast %105 : vector<1x128xf32> to vector<1x1x128xf32>
    %125 = vector.broadcast %124 : vector<1x1x128xf32> to vector<8x1x128xf32>
    %126 = arith.subf %125, %123 : vector<8x1x128xf32>
    %127 = vector.broadcast %122 : vector<8x1x128xf32> to vector<8x16x128xf32>
    %128 = arith.mulf %101, %127 : vector<8x16x128xf32>
    %129 = vector.broadcast %126 : vector<8x1x128xf32> to vector<8x16x128xf32>
    %130 = arith.addf %128, %129 : vector<8x16x128xf32>
    %cst_53 = arith.constant 0.000000e+00 : f32
    %131 = vector.broadcast %cst_53 : f32 to vector<8x16x128xf32>
    %132 = arith.maximumf %130, %131 : vector<8x16x128xf32>
    %133 = tpu.iota {dimensions = array<i32: 1>} : vector<8x16x1xi32>
    %134 = arith.sitofp %133 : vector<8x16x1xi32> to vector<8x16x1xf32>
    %135 = vector.shape_cast %0 : vector<8x1xf32> to vector<8x1x1xf32>
    %136 = vector.broadcast %135 : vector<8x1x1xf32> to vector<8x16x1xf32>
    %137 = arith.cmpf olt, %134, %136 : vector<8x16x1xf32>
    %138 = arith.extui %137 : vector<8x16x1xi1> to vector<8x16x1xi32>
    %139 = arith.sitofp %138 : vector<8x16x1xi32> to vector<8x16x1xf32>
    %140 = vector.broadcast %139 : vector<8x16x1xf32> to vector<8x16x128xf32>
    %141 = arith.mulf %132, %140 : vector<8x16x128xf32>
    %cst_54 = arith.constant dense<0.000000e+00> : vector<8x128xf32>
    %142 = vector.multi_reduction <add>, %141, %cst_54 [1] : vector<8x16x128xf32> to vector<8x128xf32>
    %143 = vector.broadcast %2 : vector<8x1xf32> to vector<8x128xf32>
    %144 = arith.mulf %142, %143 : vector<8x128xf32>
    %cst_55 = arith.constant 0.000000e+00 : f32
    %145 = vector.broadcast %cst_55 : f32 to vector<8x128xf32>
    %146 = arith.maximumf %144, %145 : vector<8x128xf32>
    %c0_56 = arith.constant 0 : index
    %c0_57 = arith.constant 0 : index
    %147 = vector.load %arg10[%c0_56, %c0_57] : memref<128x128xf32, #tpu.memory_space<vmem>>, vector<128x128xf32>
    %cst_58 = arith.constant dense<0.000000e+00> : vector<8x128xf32>
    %148 = tpu.matmul %146, %147, %cst_58 {dimension_numbers = #tpu.dot_dimension_numbers<[1], [0], [0], [1], [0, 0, 1, 1], [], []>} : vector<8x128xf32>, vector<128x128xf32>, vector<8x128xf32> -> vector<8x128xf32>
    %c0_59 = arith.constant 0 : index
    %c0_60 = arith.constant 0 : index
    %149 = vector.load %arg11[%c0_59, %c0_60] : memref<1x128xf32, #tpu.memory_space<vmem>>, vector<1x128xf32>
    %150 = vector.broadcast %149 : vector<1x128xf32> to vector<8x128xf32>
    %151 = arith.addf %148, %150 : vector<8x128xf32>
    %cst_61 = arith.constant 0.000000e+00 : f32
    %152 = vector.broadcast %cst_61 : f32 to vector<8x128xf32>
    %153 = arith.maximumf %151, %152 : vector<8x128xf32>
    %c0_62 = arith.constant 0 : index
    %c0_63 = arith.constant 0 : index
    %154 = vector.load %arg12[%c0_62, %c0_63] : memref<1x128xf32, #tpu.memory_space<vmem>>, vector<1x128xf32>
    %155 = vector.broadcast %154 : vector<1x128xf32> to vector<8x128xf32>
    %156 = arith.mulf %153, %155 : vector<8x128xf32>
    %cst_64 = arith.constant dense<0.000000e+00> : vector<8xf32>
    %157 = vector.multi_reduction <add>, %156, %cst_64 [1] : vector<8x128xf32> to vector<8xf32>
    %158 = vector.shape_cast %157 : vector<8xf32> to vector<8x1xf32>
    %c0_65 = arith.constant 0 : index
    %c0_66 = arith.constant 0 : index
    %159 = vector.load %arg13[%c0_65, %c0_66] : memref<1x1xf32, #tpu.memory_space<vmem>>, vector<1x1xf32>
    %160 = vector.broadcast %159 : vector<1x1xf32> to vector<8x1xf32>
    %161 = arith.addf %158, %160 : vector<8x1xf32>
    %162 = vector.shape_cast %161 : vector<8x1xf32> to vector<8x1xf32>
    %163 = vector.broadcast %162 : vector<8x1xf32> to vector<8x128xf32>
    %c0_67 = arith.constant 0 : index
    %c0_68 = arith.constant 0 : index
    %164 = vector.load %arg14[%c0_67, %c0_68] : memref<8x128xf32, #tpu.memory_space<vmem>>, vector<8x128xf32>
    tpu.vector_store %arg14[%c0_67, %c0_68], %163 {strides = array<i32>} : memref<8x128xf32, #tpu.memory_space<vmem>>, vector<8x128xf32>,
    return
  }
  func.func @transform_0(%arg0: i32) -> (i32, i32, i32) {
    %c0_i32 = arith.constant 0 : i32
    %c0_i32_0 = arith.constant 0 : i32
    %c0_i32_1 = arith.constant 0 : i32
    return %arg0, %c0_i32, %c0_i32_0 : i32, i32, i32
  }
  func.func @transform_1(%arg0: i32) -> (i32, i32) {
    %c0_i32 = arith.constant 0 : i32
    %c0_i32_0 = arith.constant 0 : i32
    return %arg0, %c0_i32 : i32, i32
  }
  func.func @transform_2(%arg0: i32) -> (i32, i32, i32) {
    %c0_i32 = arith.constant 0 : i32
    %c0_i32_0 = arith.constant 0 : i32
    %c0_i32_1 = arith.constant 0 : i32
    return %arg0, %c0_i32, %c0_i32_0 : i32, i32, i32
  }
  func.func @transform_3(%arg0: i32) -> (i32, i32) {
    %c0_i32 = arith.constant 0 : i32
    %c0_i32_0 = arith.constant 0 : i32
    %c0_i32_1 = arith.constant 0 : i32
    return %c0_i32, %c0_i32_0 : i32, i32
  }
  func.func @transform_4(%arg0: i32) -> (i32, i32) {
    %c0_i32 = arith.constant 0 : i32
    %c0_i32_0 = arith.constant 0 : i32
    %c0_i32_1 = arith.constant 0 : i32
    return %c0_i32, %c0_i32_0 : i32, i32
  }
  func.func @transform_5(%arg0: i32) -> (i32, i32, i32) {
    %c0_i32 = arith.constant 0 : i32
    %c0_i32_0 = arith.constant 0 : i32
    %c0_i32_1 = arith.constant 0 : i32
    %c0_i32_2 = arith.constant 0 : i32
    return %c0_i32, %c0_i32_0, %c0_i32_1 : i32, i32, i32
  }
  func.func @transform_6(%arg0: i32) -> (i32, i32, i32) {
    %c0_i32 = arith.constant 0 : i32
    %c0_i32_0 = arith.constant 0 : i32
    %c0_i32_1 = arith.constant 0 : i32
    %c0_i32_2 = arith.constant 0 : i32
    return %c0_i32, %c0_i32_0, %c0_i32_1 : i32, i32, i32
  }
  func.func @transform_7(%arg0: i32) -> (i32, i32, i32) {
    %c0_i32 = arith.constant 0 : i32
    %c0_i32_0 = arith.constant 0 : i32
    %c0_i32_1 = arith.constant 0 : i32
    %c0_i32_2 = arith.constant 0 : i32
    return %c0_i32, %c0_i32_0, %c0_i32_1 : i32, i32, i32
  }
  func.func @transform_8(%arg0: i32) -> (i32, i32, i32) {
    %c0_i32 = arith.constant 0 : i32
    %c0_i32_0 = arith.constant 0 : i32
    %c0_i32_1 = arith.constant 0 : i32
    %c0_i32_2 = arith.constant 0 : i32
    return %c0_i32, %c0_i32_0, %c0_i32_1 : i32, i32, i32
  }
  func.func @transform_9(%arg0: i32) -> (i32, i32) {
    %c0_i32 = arith.constant 0 : i32
    %c0_i32_0 = arith.constant 0 : i32
    %c0_i32_1 = arith.constant 0 : i32
    return %c0_i32, %c0_i32_0 : i32, i32
  }
  func.func @transform_10(%arg0: i32) -> (i32, i32) {
    %c0_i32 = arith.constant 0 : i32
    %c0_i32_0 = arith.constant 0 : i32
    %c0_i32_1 = arith.constant 0 : i32
    return %c0_i32, %c0_i32_0 : i32, i32
  }
  func.func @transform_11(%arg0: i32) -> (i32, i32) {
    %c0_i32 = arith.constant 0 : i32
    %c0_i32_0 = arith.constant 0 : i32
    %c0_i32_1 = arith.constant 0 : i32
    return %c0_i32, %c0_i32_0 : i32, i32
  }
  func.func @transform_12(%arg0: i32) -> (i32, i32) {
    %c0_i32 = arith.constant 0 : i32
    %c0_i32_0 = arith.constant 0 : i32
    %c0_i32_1 = arith.constant 0 : i32
    return %c0_i32, %c0_i32_0 : i32, i32
  }
  func.func @transform_13(%arg0: i32) -> (i32, i32) {
    %c0_i32 = arith.constant 0 : i32
    %c0_i32_0 = arith.constant 0 : i32
    return %arg0, %c0_i32 : i32, i32
  }
}

</mosaic_0001>

<llo_original>
// kernel: tpu_custom_call.1
$region0: #{tpu_custom_call.1}
  #allocation0 [shape = 'u32[]', space=smem, size = 0x4, offset = 0x4, fixed_abs, tag = 'smem constant byte address 0x4 - core index']
  #allocation1 [shape = 'u32[72,128]{1,0:T(1,128)}', space=vmem, size = 0x9000, scoped, tag = 'internal scratch']
  #allocation2 [shape = 'f32[1,1]{1,0:T(1,128)S(1)}', space=vmem, size = 0x200, scoped, tag = 'scoped memory for tpu_custom_call.1']
  %s0 = inlined_call_operand.vmem [shape: f32[16,16,128], index: 0, kind: input, shape index: {}]
  %s1 = inlined_call_operand.vmem [shape: f32[16,1], index: 1, kind: input, shape index: {}]
  %s2 = inlined_call_operand.vmem [shape: f32[16,16,1], index: 2, kind: input, shape index: {}]
  %s3 = inlined_call_operand.hbm [shape: f32[128,128], index: 3, kind: input, shape index: {}]
  %s4 = inlined_call_operand.vmem [shape: f32[1,128], index: 4, kind: input, shape index: {}]
  %s5 = inlined_call_operand.hbm [shape: f32[2,128,128], index: 5, kind: input, shape index: {}]
  %s6 = inlined_call_operand.vmem [shape: f32[2,1,128], index: 6, kind: input, shape index: {}]
  %s7 = inlined_call_operand.vmem [shape: f32[3,1,128], index: 7, kind: input, shape index: {}]
  %s8 = inlined_call_operand.vmem [shape: f32[3,1,128], index: 8, kind: input, shape index: {}]
  %s9 = inlined_call_operand.hbm [shape: f32[128,128], index: 9, kind: input, shape index: {}]
  %s10 = inlined_call_operand.vmem [shape: f32[1,128], index: 10, kind: input, shape index: {}]
  %s11 = inlined_call_operand.vmem [shape: f32[1,128], index: 11, kind: input, shape index: {}]
  %s12 = inlined_call_operand.<no memory space> [shape: f32[1,1], index: 12, kind: input, shape index: {}]
  %s13 = inlined_call_operand.hbm [shape: f32[16,128], index: 13, kind: output, shape index: {}]
  %s14 = sld [smem:[#allocation0]]
  $region97: #{tpu_custom_call.1} parent=0
    _
  %s16 = ssub.s32 1, %s14
  %s17 = scalar_select 0, %s16, %s14
  %v18 = vstv %s12
  %19 = vst [vmem:[#allocation2] sm:$0x1] %v18
  $region1: #{tpu_custom_call.1} parent=0
    #allocation3 [shape = 'u8[65536]{0}', space=vmem, size = 0x10000, scoped, tag = 'input window, operand 3, single buffered']
    #allocation4 [shape = 's32[2]{0}', space=sflag, size = 0x8, scoped, tag = 'scoped memory for tpu_custom_call.1']
    #allocation5 [shape = 's32[2]{0}', space=sflag, size = 0x8, scoped, tag = 'scoped memory for tpu_custom_call.1']
    #allocation6 [shape = 'u8[131072]{0}', space=vmem, size = 0x20000, scoped, tag = 'input window, operand 5, single buffered']
    #allocation7 [shape = 's32[1]{0}', space=sflag, size = 0x4, scoped, tag = 'scoped memory for tpu_custom_call.1']
    #allocation8 [shape = 'u8[65536]{0}', space=vmem, size = 0x10000, scoped, tag = 'input window, operand 9, single buffered']
    #allocation9 [shape = 'u8[8192]{0}', space=vmem, size = 0x2000, scoped, tag = 'output window, operand 0']
    %20 = vsyncpa [#allocation4], 0
    %21 = vsyncpa [#allocation7], 0
    %22 = vsyncpa [#allocation5], 0
    %s23 = scalar_lea.sflag [#allocation5], 1
    %24 = vsyncpa %s23, 0
    loop: start=0, step=1, limit=4
    $region2: #{tpu_custom_call.1} parent=1 // loop_pre_header
      _
    $region3: #{tpu_custom_call.1} parent=1 // loop_header
      %s26 = sphi 0, %s30
      %p27 = scmp.ge.s32.totalorder %s26, 4
      %s36 = sphi 0, %s38
      %s39 = sphi 0, %s36
      %s40 = sphi 0, %s39
      %s56 = sphi 0, %s40
      %s62 = sphi 0, %s64
      %s65 = sphi 0, %s62
      %s66 = sphi 0, %s65
      %s82 = sphi 0, %s66
      %s88 = sphi 0, %s90
      %s91 = sphi 0, %s88
      %s92 = sphi 0, %s91
      %s108 = sphi 0, %s92
      %s112 = sphi 0, %s112
      %s114 = sphi 0, %s112
      %s115 = sphi 0, %s114
      %s129 = sphi 0, %s115
      %s133 = sphi 0, %s133
      %s135 = sphi 0, %s133
      %s136 = sphi 0, %s135
      %s150 = sphi 0, %s136
      %s154 = sphi 0, %s154
      %s156 = sphi 0, %s154
      %s157 = sphi 0, %s156
      %s171 = sphi 0, %s157
      %s175 = sphi 0, %s175
      %s177 = sphi 0, %s175
      %s178 = sphi 0, %s177
      %s192 = sphi 0, %s178
      %s196 = sphi 0, %s196
      %s198 = sphi 0, %s196
      %s199 = sphi 0, %s198
      %s213 = sphi 0, %s199
      %s217 = sphi 0, %s217
      %s219 = sphi 0, %s217
      %s220 = sphi 0, %s219
      %s234 = sphi 0, %s220
      %s238 = sphi 0, %s238
      %s240 = sphi 0, %s238
      %s241 = sphi 0, %s240
      %s255 = sphi 0, %s241
      %s259 = sphi 0, %s259
      %s261 = sphi 0, %s259
      %s262 = sphi 0, %s261
      %s276 = sphi 0, %s262
      %s280 = sphi 0, %s280
      %s282 = sphi 0, %s280
      %s283 = sphi 0, %s282
      %s297 = sphi 0, %s283
      %s301 = sphi 0, %s301
      %s303 = sphi 0, %s301
      %s304 = sphi 0, %s303
      %s318 = sphi 0, %s304
      %s324 = sphi 0, %s326
      %s327 = sphi 0, %s324
      %s328 = sphi 0, %s327
      %s344 = sphi 0, %s328
    $region4: #{tpu_custom_call.1} parent=1 // loop_header_branch
      %29 = sbr.rel (%p27) target = $region8
    $region5: #{tpu_custom_call.1} parent=1 // loop_body
      %s31 = ssub.s32 %s26, 1
      %s32 = ssub.s32 %s26, 2
      %s33 = sadd.s32 %s26, 1
      %s34 = ssub.s32 %s26, %s33
      %p35 = scmp.eq.s32.totalorder %s34, 0
      %s37 = sadd.s32 %s36, 1
      %s38 = scalar_select %p35, %s36, %s37
      %p41 = pneg %p35
      %p42 = scmp.eq.s32.totalorder %s26, 1
      %p43 = por %p41, %p42
      %p44 = scmp.ne.s32.totalorder %s36, %s39
      %p45 = scmp.eq.s32.totalorder %s26, 0
      %p46 = por %p44, %p45
      %p47 = scmp.ne.s32.totalorder %s36, %s39
      %p48 = scmp.eq.s32.totalorder %s31, 1
      %p49 = por %p47, %p48
      %p50 = scmp.ne.s32.totalorder %s39, %s40
      %p51 = scmp.eq.s32.totalorder %s31, 0
      %p52 = por %p50, %p51
      %p53 = scmp.ne.s32.totalorder %s39, %s40
      %p54 = scmp.eq.s32.totalorder %s32, 1
      %p55 = por %p53, %p54
      %p57 = scmp.ne.s32.totalorder %s40, %s56
      %p58 = scmp.eq.s32.totalorder %s32, 0
      %p59 = por %p57, %p58
      %s60 = ssub.s32 %s26, %s33
      %p61 = scmp.eq.s32.totalorder %s60, 0
      %s63 = sadd.s32 %s62, 1
      %s64 = scalar_select %p61, %s62, %s63
      %p67 = pneg %p61
      %p68 = scmp.eq.s32.totalorder %s26, 1
      %p69 = por %p67, %p68
      %p70 = scmp.ne.s32.totalorder %s62, %s65
      %p71 = scmp.eq.s32.totalorder %s26, 0
      %p72 = por %p70, %p71
      %p73 = scmp.ne.s32.totalorder %s62, %s65
      %p74 = scmp.eq.s32.totalorder %s31, 1
      %p75 = por %p73, %p74
      %p76 = scmp.ne.s32.totalorder %s65, %s66
      %p77 = scmp.eq.s32.totalorder %s31, 0
      %p78 = por %p76, %p77
      %p79 = scmp.ne.s32.totalorder %s65, %s66
      %p80 = scmp.eq.s32.totalorder %s32, 1
      %p81 = por %p79, %p80
      %p83 = scmp.ne.s32.totalorder %s66, %s82
      %p84 = scmp.eq.s32.totalorder %s32, 0
      %p85 = por %p83, %p84
      %s86 = ssub.s32 %s26, %s33
      %p87 = scmp.eq.s32.totalorder %s86, 0
      %s89 = sadd.s32 %s88, 1
      %s90 = scalar_select %p87, %s88, %s89
      %p93 = pneg %p87
      %p94 = scmp.eq.s32.totalorder %s26, 1
      %p95 = por %p93, %p94
      %p96 = scmp.ne.s32.totalorder %s88, %s91
      %p97 = scmp.eq.s32.totalorder %s26, 0
      %p98 = por %p96, %p97
      %p99 = scmp.ne.s32.totalorder %s88, %s91
      %p100 = scmp.eq.s32.totalorder %s31, 1
      %p101 = por %p99, %p100
      %p102 = scmp.ne.s32.totalorder %s91, %s92
      %p103 = scmp.eq.s32.totalorder %s31, 0
      %p104 = por %p102, %p103
      %p105 = scmp.ne.s32.totalorder %s91, %s92
      %p106 = scmp.eq.s32.totalorder %s32, 1
      %p107 = por %p105, %p106
      %p109 = scmp.ne.s32.totalorder %s92, %s108
      %p110 = scmp.eq.s32.totalorder %s32, 0
      %p111 = por %p109, %p110
      %s113 = sadd.s32 %s112, 1
      %p116 = scmp.eq.s32.totalorder %s26, 1
      %p117 = scmp.ne.s32.totalorder %s112, %s114
      %p118 = scmp.eq.s32.totalorder %s26, 0
      %p119 = por %p117, %p118
      %p120 = scmp.ne.s32.totalorder %s112, %s114
      %p121 = scmp.eq.s32.totalorder %s31, 1
      %p122 = por %p120, %p121
      %p123 = scmp.ne.s32.totalorder %s114, %s115
      %p124 = scmp.eq.s32.totalorder %s31, 0
      %p125 = por %p123, %p124
      %p126 = scmp.ne.s32.totalorder %s114, %s115
      %p127 = scmp.eq.s32.totalorder %s32, 1
      %p128 = por %p126, %p127
      %p130 = scmp.ne.s32.totalorder %s115, %s129
      %p131 = scmp.eq.s32.totalorder %s32, 0
      %p132 = por %p130, %p131
      %s134 = sadd.s32 %s133, 1
      %p137 = scmp.eq.s32.totalorder %s26, 1
      %p138 = scmp.ne.s32.totalorder %s133, %s135
      %p139 = scmp.eq.s32.totalorder %s26, 0
      %p140 = por %p138, %p139
      %p141 = scmp.ne.s32.totalorder %s133, %s135
      %p142 = scmp.eq.s32.totalorder %s31, 1
      %p143 = por %p141, %p142
      %p144 = scmp.ne.s32.totalorder %s135, %s136
      %p145 = scmp.eq.s32.totalorder %s31, 0
      %p146 = por %p144, %p145
      %p147 = scmp.ne.s32.totalorder %s135, %s136
      %p148 = scmp.eq.s32.totalorder %s32, 1
      %p149 = por %p147, %p148
      %p151 = scmp.ne.s32.totalorder %s136, %s150
      %p152 = scmp.eq.s32.totalorder %s32, 0
      %p153 = por %p151, %p152
      %s155 = sadd.s32 %s154, 1
      %p158 = scmp.eq.s32.totalorder %s26, 1
      %p159 = scmp.ne.s32.totalorder %s154, %s156
      %p160 = scmp.eq.s32.totalorder %s26, 0
      %p161 = por %p159, %p160
      %p162 = scmp.ne.s32.totalorder %s154, %s156
      %p163 = scmp.eq.s32.totalorder %s31, 1
      %p164 = por %p162, %p163
      %p165 = scmp.ne.s32.totalorder %s156, %s157
      %p166 = scmp.eq.s32.totalorder %s31, 0
      %p167 = por %p165, %p166
      %p168 = scmp.ne.s32.totalorder %s156, %s157
      %p169 = scmp.eq.s32.totalorder %s32, 1
      %p170 = por %p168, %p169
      %p172 = scmp.ne.s32.totalorder %s157, %s171
      %p173 = scmp.eq.s32.totalorder %s32, 0
      %p174 = por %p172, %p173
      %s176 = sadd.s32 %s175, 1
      %p179 = scmp.eq.s32.totalorder %s26, 1
      %p180 = scmp.ne.s32.totalorder %s175, %s177
      %p181 = scmp.eq.s32.totalorder %s26, 0
      %p182 = por %p180, %p181
      %p183 = scmp.ne.s32.totalorder %s175, %s177
      %p184 = scmp.eq.s32.totalorder %s31, 1
      %p185 = por %p183, %p184
      %p186 = scmp.ne.s32.totalorder %s177, %s178
      %p187 = scmp.eq.s32.totalorder %s31, 0
      %p188 = por %p186, %p187
      %p189 = scmp.ne.s32.totalorder %s177, %s178
      %p190 = scmp.eq.s32.totalorder %s32, 1
      %p191 = por %p189, %p190
      %p193 = scmp.ne.s32.totalorder %s178, %s192
      %p194 = scmp.eq.s32.totalorder %s32, 0
      %p195 = por %p193, %p194
      %s197 = sadd.s32 %s196, 1
      %p200 = scmp.eq.s32.totalorder %s26, 1
      %p201 = scmp.ne.s32.totalorder %s196, %s198
      %p202 = scmp.eq.s32.totalorder %s26, 0
      %p203 = por %p201, %p202
      %p204 = scmp.ne.s32.totalorder %s196, %s198
      %p205 = scmp.eq.s32.totalorder %s31, 1
      %p206 = por %p204, %p205
      %p207 = scmp.ne.s32.totalorder %s198, %s199
      %p208 = scmp.eq.s32.totalorder %s31, 0
      %p209 = por %p207, %p208
      %p210 = scmp.ne.s32.totalorder %s198, %s199
      %p211 = scmp.eq.s32.totalorder %s32, 1
      %p212 = por %p210, %p211
      %p214 = scmp.ne.s32.totalorder %s199, %s213
      %p215 = scmp.eq.s32.totalorder %s32, 0
      %p216 = por %p214, %p215
      %s218 = sadd.s32 %s217, 1
      %p221 = scmp.eq.s32.totalorder %s26, 1
      %p222 = scmp.ne.s32.totalorder %s217, %s219
      %p223 = scmp.eq.s32.totalorder %s26, 0
      %p224 = por %p222, %p223
      %p225 = scmp.ne.s32.totalorder %s217, %s219
      %p226 = scmp.eq.s32.totalorder %s31, 1
      %p227 = por %p225, %p226
      %p228 = scmp.ne.s32.totalorder %s219, %s220
      %p229 = scmp.eq.s32.totalorder %s31, 0
      %p230 = por %p228, %p229
      %p231 = scmp.ne.s32.totalorder %s219, %s220
      %p232 = scmp.eq.s32.totalorder %s32, 1
      %p233 = por %p231, %p232
      %p235 = scmp.ne.s32.totalorder %s220, %s234
      %p236 = scmp.eq.s32.totalorder %s32, 0
      %p237 = por %p235, %p236
      %s239 = sadd.s32 %s238, 1
      %p242 = scmp.eq.s32.totalorder %s26, 1
      %p243 = scmp.ne.s32.totalorder %s238, %s240
      %p244 = scmp.eq.s32.totalorder %s26, 0
      %p245 = por %p243, %p244
      %p246 = scmp.ne.s32.totalorder %s238, %s240
      %p247 = scmp.eq.s32.totalorder %s31, 1
      %p248 = por %p246, %p247
      %p249 = scmp.ne.s32.totalorder %s240, %s241
      %p250 = scmp.eq.s32.totalorder %s31, 0
      %p251 = por %p249, %p250
      %p252 = scmp.ne.s32.totalorder %s240, %s241
      %p253 = scmp.eq.s32.totalorder %s32, 1
      %p254 = por %p252, %p253
      %p256 = scmp.ne.s32.totalorder %s241, %s255
      %p257 = scmp.eq.s32.totalorder %s32, 0
      %p258 = por %p256, %p257
      %s260 = sadd.s32 %s259, 1
      %p263 = scmp.eq.s32.totalorder %s26, 1
      %p264 = scmp.ne.s32.totalorder %s259, %s261
      %p265 = scmp.eq.s32.totalorder %s26, 0
      %p266 = por %p264, %p265
      %p267 = scmp.ne.s32.totalorder %s259, %s261
      %p268 = scmp.eq.s32.totalorder %s31, 1
      %p269 = por %p267, %p268
      %p270 = scmp.ne.s32.totalorder %s261, %s262
      %p271 = scmp.eq.s32.totalorder %s31, 0
      %p272 = por %p270, %p271
      %p273 = scmp.ne.s32.totalorder %s261, %s262
      %p274 = scmp.eq.s32.totalorder %s32, 1
      %p275 = por %p273, %p274
      %p277 = scmp.ne.s32.totalorder %s262, %s276
      %p278 = scmp.eq.s32.totalorder %s32, 0
      %p279 = por %p277, %p278
      %s281 = sadd.s32 %s280, 1
      %p284 = scmp.eq.s32.totalorder %s26, 1
      %p285 = scmp.ne.s32.totalorder %s280, %s282
      %p286 = scmp.eq.s32.totalorder %s26, 0
      %p287 = por %p285, %p286
      %p288 = scmp.ne.s32.totalorder %s280, %s282
      %p289 = scmp.eq.s32.totalorder %s31, 1
      %p290 = por %p288, %p289
      %p291 = scmp.ne.s32.totalorder %s282, %s283
      %p292 = scmp.eq.s32.totalorder %s31, 0
      %p293 = por %p291, %p292
      %p294 = scmp.ne.s32.totalorder %s282, %s283
      %p295 = scmp.eq.s32.totalorder %s32, 1
      %p296 = por %p294, %p295
      %p298 = scmp.ne.s32.totalorder %s283, %s297
      %p299 = scmp.eq.s32.totalorder %s32, 0
      %p300 = por %p298, %p299
      %s302 = sadd.s32 %s301, 1
      %p305 = scmp.eq.s32.totalorder %s26, 1
      %p306 = scmp.ne.s32.totalorder %s301, %s303
      %p307 = scmp.eq.s32.totalorder %s26, 0
      %p308 = por %p306, %p307
      %p309 = scmp.ne.s32.totalorder %s301, %s303
      %p310 = scmp.eq.s32.totalorder %s31, 1
      %p311 = por %p309, %p310
      %p312 = scmp.ne.s32.totalorder %s303, %s304
      %p313 = scmp.eq.s32.totalorder %s31, 0
      %p314 = por %p312, %p313
      %p315 = scmp.ne.s32.totalorder %s303, %s304
      %p316 = scmp.eq.s32.totalorder %s32, 1
      %p317 = por %p315, %p316
      %p319 = scmp.ne.s32.totalorder %s304, %s318
      %p320 = scmp.eq.s32.totalorder %s32, 0
      %p321 = por %p319, %p320
      %s322 = ssub.s32 %s26, %s33
      %p323 = scmp.eq.s32.totalorder %s322, 0
      %s325 = sadd.s32 %s324, 1
      %s326 = scalar_select %p323, %s324, %s325
      %p329 = pneg %p323
      %p330 = scmp.eq.s32.totalorder %s26, 1
      %p331 = por %p329, %p330
      %p332 = scmp.ne.s32.totalorder %s324, %s327
      %p333 = scmp.eq.s32.totalorder %s26, 0
      %p334 = por %p332, %p333
      %p335 = scmp.ne.s32.totalorder %s324, %s327
      %p336 = scmp.eq.s32.totalorder %s31, 1
      %p337 = por %p335, %p336
      %p338 = scmp.ne.s32.totalorder %s327, %s328
      %p339 = scmp.eq.s32.totalorder %s31, 0
      %p340 = por %p338, %p339
      %p341 = scmp.ne.s32.totalorder %s327, %s328
      %p342 = scmp.eq.s32.totalorder %s32, 1
      %p343 = por %p341, %p342
      %p345 = scmp.ne.s32.totalorder %s328, %s344
      %p346 = scmp.eq.s32.totalorder %s32, 0
      %p347 = por %p345, %p346
      %p348 = scmp.le.s32.totalorder 1, %s26
      %p349 = scmp.lt.s32.totalorder %s26, 3
      %p350 = pnand %p348, %p349
      %p351 = pneg %p350
      // Predicated region
      $region9: #{tpu_custom_call.1} parent=5 // pred_check
        _
      $region10: #{tpu_custom_call.1} parent=5 // pred_check_branch
        %353 = sbr.rel (%p350) target = $region12
      $region11: #{tpu_custom_call.1} parent=5 // pred_region
        %s354 = ssub.s32 %s26, 1
        // Predicated region
        $region13: #{tpu_custom_call.1} parent=11 // pred_check
          %p355 = pneg %p125
        $region14: #{tpu_custom_call.1} parent=11 // pred_check_branch
          %357 = sbr.rel (%p355) target = $region16
        $region15: #{tpu_custom_call.1} parent=11 // pred_region
          %359 = vsyncadd [#allocation4], 0
          %s360 = sshll.u32 %s3, 4
          %s361 = int_to_ptr.hbm [resolvable:$true] %s360
          %s362 = sshll.u32 [#allocation3], 4
          %s363 = int_to_ptr.vmem [resolvable:$true] %s362
          %368 = dma.hbm_to_vmem [thread:$0]  %s361, 2048, %s363, [#allocation4], 128, 128, 8
        $region16: #{tpu_custom_call.1} parent=11 // pred_fallthru
          _
        // Predicated region
        $region17: #{tpu_custom_call.1} parent=11 // pred_check
          %p369 = pneg %p146
        $region18: #{tpu_custom_call.1} parent=11 // pred_check_branch
          %371 = sbr.rel (%p369) target = $region20
        $region19: #{tpu_custom_call.1} parent=11 // pred_region
          _
        $region20: #{tpu_custom_call.1} parent=11 // pred_fallthru
          _
        // Predicated region
        $region21: #{tpu_custom_call.1} parent=11 // pred_check
          %p372 = pneg %p167
        $region22: #{tpu_custom_call.1} parent=11 // pred_check_branch
          %374 = sbr.rel (%p372) target = $region24
        $region23: #{tpu_custom_call.1} parent=11 // pred_region
          %376 = vsyncadd [#allocation7], 0
          %s377 = sshll.u32 %s5, 4
          %s378 = int_to_ptr.hbm [resolvable:$true] %s377
          %s379 = sshll.u32 [#allocation6], 4
          %s380 = int_to_ptr.vmem [resolvable:$true] %s379
          %385 = dma.hbm_to_vmem [thread:$0]  %s378, 4096, %s380, [#allocation7], 128, 128, 8
        $region24: #{tpu_custom_call.1} parent=11 // pred_fallthru
          _
        // Predicated region
        $region25: #{tpu_custom_call.1} parent=11 // pred_check
          %p386 = pneg %p188
        $region26: #{tpu_custom_call.1} parent=11 // pred_check_branch
          %388 = sbr.rel (%p386) target = $region28
        $region27: #{tpu_custom_call.1} parent=11 // pred_region
          _
        $region28: #{tpu_custom_call.1} parent=11 // pred_fallthru
          _
        // Predicated region
        $region29: #{tpu_custom_call.1} parent=11 // pred_check
          %p389 = pneg %p209
        $region30: #{tpu_custom_call.1} parent=11 // pred_check_branch
          %391 = sbr.rel (%p389) target = $region32
        $region31: #{tpu_custom_call.1} parent=11 // pred_region
          _
        $region32: #{tpu_custom_call.1} parent=11 // pred_fallthru
          _
        // Predicated region
        $region33: #{tpu_custom_call.1} parent=11 // pred_check
          %p392 = pneg %p230
        $region34: #{tpu_custom_call.1} parent=11 // pred_check_branch
          %394 = sbr.rel (%p392) target = $region36
        $region35: #{tpu_custom_call.1} parent=11 // pred_region
          _
        $region36: #{tpu_custom_call.1} parent=11 // pred_fallthru
          _
        // Predicated region
        $region37: #{tpu_custom_call.1} parent=11 // pred_check
          %p395 = pneg %p251
        $region38: #{tpu_custom_call.1} parent=11 // pred_check_branch
          %397 = sbr.rel (%p395) target = $region40
        $region39: #{tpu_custom_call.1} parent=11 // pred_region
          %399 = vsyncadd [#allocation7], 0
          %s400 = sshll.u32 %s9, 4
          %s401 = int_to_ptr.hbm [resolvable:$true] %s400
          %s402 = sshll.u32 [#allocation8], 4
          %s403 = int_to_ptr.vmem [resolvable:$true] %s402
          %408 = dma.hbm_to_vmem [thread:$0]  %s401, 2048, %s403, [#allocation7], 128, 128, 8
        $region40: #{tpu_custom_call.1} parent=11 // pred_fallthru
          _
        // Predicated region
        $region41: #{tpu_custom_call.1} parent=11 // pred_check
          %p409 = pneg %p272
        $region42: #{tpu_custom_call.1} parent=11 // pred_check_branch
          %411 = sbr.rel (%p409) target = $region44
        $region43: #{tpu_custom_call.1} parent=11 // pred_region
          _
        $region44: #{tpu_custom_call.1} parent=11 // pred_fallthru
          _
        // Predicated region
        $region45: #{tpu_custom_call.1} parent=11 // pred_check
          %p412 = pneg %p293
        $region46: #{tpu_custom_call.1} parent=11 // pred_check_branch
          %414 = sbr.rel (%p412) target = $region48
        $region47: #{tpu_custom_call.1} parent=11 // pred_region
          _
        $region48: #{tpu_custom_call.1} parent=11 // pred_fallthru
          _
        // Predicated region
        $region49: #{tpu_custom_call.1} parent=11 // pred_check
          %p415 = pneg %p314
        $region50: #{tpu_custom_call.1} parent=11 // pred_check_branch
          %417 = sbr.rel (%p415) target = $region52
        $region51: #{tpu_custom_call.1} parent=11 // pred_region
          _
        $region52: #{tpu_custom_call.1} parent=11 // pred_fallthru
          _
      $region12: #{tpu_custom_call.1} parent=5 // pred_fallthru
        _
      %p418 = scmp.lt.s32.totalorder %s26, 2
      // Predicated region
      $region53: #{tpu_custom_call.1} parent=5 // pred_check
        %p419 = pneg %p418
      $region54: #{tpu_custom_call.1} parent=5 // pred_check_branch
        %421 = sbr.rel (%p419) target = $region56
      $region55: #{tpu_custom_call.1} parent=5 // pred_region
        // Predicated region
        $region57: #{tpu_custom_call.1} parent=55 // pred_check
          %p422 = pneg %p46
        $region58: #{tpu_custom_call.1} parent=55 // pred_check_branch
          %424 = sbr.rel (%p422) target = $region60
        $region59: #{tpu_custom_call.1} parent=55 // pred_region
          %s425 = smul.u32 8, %s26
          %p426 = scmp.lt.s32.totalorder %s425, 15
          %s427 = scalar_select %p426, %s425, 15
          %s428 = smul.addr %s427, 2
          %s429 = smul.addr %s428, 8
          %s430 = scalar_lea.vmem %s0, %s429
          %s431 = smul.u32 8, %s26
        $region60: #{tpu_custom_call.1} parent=55 // pred_fallthru
          _
        // Predicated region
        $region61: #{tpu_custom_call.1} parent=55 // pred_check
          %p432 = pneg %p72
        $region62: #{tpu_custom_call.1} parent=55 // pred_check_branch
          %434 = sbr.rel (%p432) target = $region64
        $region63: #{tpu_custom_call.1} parent=55 // pred_region
          %p435 = scmp.lt.s32.totalorder %s26, 1
          %s436 = scalar_select %p435, %s26, 1
          %s437 = smul.addr %s436, 8
          %s438 = scalar_lea.vmem %s1, %s437
        $region64: #{tpu_custom_call.1} parent=55 // pred_fallthru
          _
        // Predicated region
        $region65: #{tpu_custom_call.1} parent=55 // pred_check
          %p439 = pneg %p98
        $region66: #{tpu_custom_call.1} parent=55 // pred_check_branch
          %441 = sbr.rel (%p439) target = $region68
        $region67: #{tpu_custom_call.1} parent=55 // pred_region
          %s442 = smul.u32 8, %s26
          %p443 = scmp.lt.s32.totalorder %s442, 15
          %s444 = scalar_select %p443, %s442, 15
          %s445 = smul.addr %s444, 2
          %s446 = smul.addr %s445, 8
          %s447 = scalar_lea.vmem %s2, %s446
          %s448 = smul.u32 8, %s26
        $region68: #{tpu_custom_call.1} parent=55 // pred_fallthru
          _
      $region56: #{tpu_custom_call.1} parent=5 // pred_fallthru
        _
      %p449 = scmp.le.s32.totalorder 1, %s26
      %p450 = scmp.lt.s32.totalorder %s26, 3
      %p451 = pnand %p449, %p450
      %p452 = pneg %p451
      // Predicated region
      $region69: #{tpu_custom_call.1} parent=5 // pred_check
        _
      $region70: #{tpu_custom_call.1} parent=5 // pred_check_branch
        %454 = sbr.rel (%p451) target = $region72
      $region71: #{tpu_custom_call.1} parent=5 // pred_region
        %s455 = ssub.s32 %s26, 1
        // Predicated region
        $region73: #{tpu_custom_call.1} parent=71 // pred_check
          %p456 = pneg %p125
        $region74: #{tpu_custom_call.1} parent=71 // pred_check_branch
          %458 = sbr.rel (%p456) target = $region76
        $region75: #{tpu_custom_call.1} parent=71 // pred_region
          %460 = dma.done [#allocation4], 2048
        $region76: #{tpu_custom_call.1} parent=71 // pred_fallthru
          _
        // Predicated region
        $region77: #{tpu_custom_call.1} parent=71 // pred_check
          %p461 = pneg %p167
        $region78: #{tpu_custom_call.1} parent=71 // pred_check_branch
          %463 = sbr.rel (%p461) target = $region80
        $region79: #{tpu_custom_call.1} parent=71 // pred_region
          %465 = dma.done [#allocation7], 4096
        $region80: #{tpu_custom_call.1} parent=71 // pred_fallthru
          _
        // Predicated region
        $region81: #{tpu_custom_call.1} parent=71 // pred_check
          %p466 = pneg %p251
        $region82: #{tpu_custom_call.1} parent=71 // pred_check_branch
          %468 = sbr.rel (%p466) target = $region84
        $region83: #{tpu_custom_call.1} parent=71 // pred_region
          %470 = dma.done [#allocation7], 2048
        $region84: #{tpu_custom_call.1} parent=71 // pred_fallthru
          _
        %s471 = smul.u32 8, %s31
        %p472 = scmp.lt.s32.totalorder %s471, 15
        %s473 = scalar_select %p472, %s471, 15
        %s474 = smul.addr %s473, 2
        %s475 = smul.addr %s474, 8
        %s476 = scalar_lea.vmem %s0, %s475
        %p477 = pneg %p52
        %p478 = pneg %p49
        %p479 = scmp.lt.s32.totalorder %s31, 1
        %s480 = scalar_select %p479, %s31, 1
        %s481 = smul.addr %s480, 8
        %s482 = scalar_lea.vmem %s1, %s481
        %p483 = pneg %p78
        %p484 = pneg %p75
        %s485 = smul.u32 8, %s31
        %p486 = scmp.lt.s32.totalorder %s485, 15
        %s487 = scalar_select %p486, %s485, 15
        %s488 = smul.addr %s487, 2
        %s489 = smul.addr %s488, 8
        %s490 = scalar_lea.vmem %s2, %s489
        %p491 = pneg %p104
        %p492 = pneg %p101
        %p493 = pneg %p125
        %p494 = pneg %p122
        %p495 = pneg %p146
        %p496 = pneg %p143
        %p497 = pneg %p167
        %p498 = pneg %p164
        %p499 = pneg %p188
        %p500 = pneg %p185
        %p501 = pneg %p209
        %p502 = pneg %p206
        %p503 = pneg %p230
        %p504 = pneg %p227
        %p505 = pneg %p251
        %p506 = pneg %p248
        %p507 = pneg %p272
        %p508 = pneg %p269
        %p509 = pneg %p293
        %p510 = pneg %p290
        %p511 = pneg %p314
        %p512 = pneg %p311
        %p513 = pneg %p340
        %p514 = pneg %p337
        %s515 = sand.u32 %s327, 1
        %s516 = scalar_lea.sflag [#allocation5], %s515
        %s517 = sand.u32 %s327, 1
        %s518 = smul.addr %s517, 8
        %s519 = scalar_lea.vmem [#allocation9], %s518
        %s520 = smul.u32 8, %s31
        %p521 = scmp.lt.s32.totalorder %s520, 15
        %s522 = scalar_select %p521, %s520, 15
        %s523 = smul.addr %s522, 2
        %s524 = smul.addr %s523, 8
        %s525 = scalar_lea.vmem %s0, %s524
        %s526 = smul.u32 8, %s31
        %p527 = scmp.lt.s32.totalorder %s31, 1
        %s528 = scalar_select %p527, %s31, 1
        %s529 = smul.addr %s528, 8
        %s530 = scalar_lea.vmem %s1, %s529
        %s531 = smul.u32 8, %s31
        %p532 = scmp.lt.s32.totalorder %s531, 15
        %s533 = scalar_select %p532, %s531, 15
        %s534 = smul.addr %s533, 2
        %s535 = smul.addr %s534, 8
        %s536 = scalar_lea.vmem %s2, %s535
        %s537 = smul.u32 8, %s31
        %v538 = vld [vmem:[%s530] sm:$0xff]
        %v539 = vrcp.pop %v538
        %v540 = vmul.f32 %v538, %v539
        %v541 = vsub.f32 1.0, %v540
        %v542 = vmul.f32 %v539, %v541
        %v543 = vadd.f32 %v539, %v542
        %vm544 = vweird.f32 %v538
        %vm545 = vweird.f32 %v539
        %vm546 = vmor %vm544, %vm545
        %v547 = vsel %vm546, %v539, %v543
        %v548 = vand.u32 2147483647, %v538
        %vm549 = vcmp.eq.f32.partialorder %v548, 8.507059e+37
        %v550 = vand.u32 %v538, 2147483648
        %v551 = vor.u32 1.1754944e-38, %v550
        %v552 = vsel %vm549, %v551, %v547
        %v553 = vmul.f32 1.0, %v552
        %v555 = vrot.slane %v553, 1
        %v556 = vrot.slane %v553, 2
        %v557 = vrot.slane %v553, 3
        %v558 = vrot.slane %v553, 4
        %v559 = vrot.slane %v553, 5
        %v560 = vrot.slane %v553, 6
        %v561 = vrot.slane %v553, 7
        %v562 = vld [vmem:[%s536] sm:$0xff]
        %v563 = vld [vmem:[%s536 + $0x8] sm:$0xff]
        %v564 = vld [vmem:[%s536 + $0x10] sm:$0xff]
        %v565 = vld [vmem:[%s536 + $0x18] sm:$0xff]
        %v566 = vld [vmem:[%s536 + $0x20] sm:$0xff]
        %v567 = vld [vmem:[%s536 + $0x28] sm:$0xff]
        %v568 = vld [vmem:[%s536 + $0x30] sm:$0xff]
        %v569 = vld [vmem:[%s536 + $0x38] sm:$0xff]
        %v570 = vld [vmem:[%s536 + $0x40] sm:$0xff]
        %v571 = vld [vmem:[%s536 + $0x48] sm:$0xff]
        %v572 = vld [vmem:[%s536 + $0x50] sm:$0xff]
        %v573 = vld [vmem:[%s536 + $0x58] sm:$0xff]
        %v574 = vld [vmem:[%s536 + $0x60] sm:$0xff]
        %v575 = vld [vmem:[%s536 + $0x68] sm:$0xff]
        %v576 = vld [vmem:[%s536 + $0x70] sm:$0xff]
        %v577 = vld [vmem:[%s536 + $0x78] sm:$0xff]
        %v578 = vld [vmem:[%s525] sm:$0xff]
        %v579 = vld [vmem:[%s525 + $0x8] sm:$0xff]
        %v580 = vld [vmem:[%s525 + $0x10] sm:$0xff]
        %v581 = vld [vmem:[%s525 + $0x18] sm:$0xff]
        %v582 = vld [vmem:[%s525 + $0x20] sm:$0xff]
        %v583 = vld [vmem:[%s525 + $0x28] sm:$0xff]
        %v584 = vld [vmem:[%s525 + $0x30] sm:$0xff]
        %v585 = vld [vmem:[%s525 + $0x38] sm:$0xff]
        %v586 = vld [vmem:[%s525 + $0x40] sm:$0xff]
        %v587 = vld [vmem:[%s525 + $0x48] sm:$0xff]
        %v588 = vld [vmem:[%s525 + $0x50] sm:$0xff]
        %v589 = vld [vmem:[%s525 + $0x58] sm:$0xff]
        %v590 = vld [vmem:[%s525 + $0x60] sm:$0xff]
        %v591 = vld [vmem:[%s525 + $0x68] sm:$0xff]
        %v592 = vld [vmem:[%s525 + $0x70] sm:$0xff]
        %v593 = vld [vmem:[%s525 + $0x78] sm:$0xff]
        %v594 = vld [vmem:[#allocation3] sm:$0xff]
        %v595 = vld [vmem:[#allocation3 + $0x8] sm:$0xff]
        %v596 = vld [vmem:[#allocation3 + $0x10] sm:$0xff]
        %v597 = vld [vmem:[#allocation3 + $0x18] sm:$0xff]
        %v598 = vld [vmem:[#allocation3 + $0x20] sm:$0xff]
        %v599 = vld [vmem:[#allocation3 + $0x28] sm:$0xff]
        %v600 = vld [vmem:[#allocation3 + $0x30] sm:$0xff]
        %v601 = vld [vmem:[#allocation3 + $0x38] sm:$0xff]
        %v602 = vld [vmem:[#allocation3 + $0x40] sm:$0xff]
        %v603 = vld [vmem:[#allocation3 + $0x48] sm:$0xff]
        %v604 = vld [vmem:[#allocation3 + $0x50] sm:$0xff]
        %v605 = vld [vmem:[#allocation3 + $0x58] sm:$0xff]
        %v606 = vld [vmem:[#allocation3 + $0x60] sm:$0xff]
        %v607 = vld [vmem:[#allocation3 + $0x68] sm:$0xff]
        %v608 = vld [vmem:[#allocation3 + $0x70] sm:$0xff]
        %v609 = vld [vmem:[#allocation3 + $0x78] sm:$0xff]
        %610 = vmatpush.msra.mxu0 %v609
        %611 = vmatpush.msra.mxu0 %v608
        %612 = vmatpush.msra.mxu0 %v607
        %613 = vmatpush.msra.mxu0 %v606
        %614 = vmatpush.msra.mxu0 %v605
        %615 = vmatpush.msra.mxu0 %v604
        %616 = vmatpush.msra.mxu0 %v603
        %617 = vmatpush.msra.mxu0 %v602
        %618 = vmatpush.msra.mxu0 %v601
        %619 = vmatpush.msra.mxu0 %v600
        %620 = vmatpush.msra.mxu0 %v599
        %621 = vmatpush.msra.mxu0 %v598
        %622 = vmatpush.msra.mxu0 %v597
        %623 = vmatpush.msra.mxu0 %v596
        %624 = vmatpush.msra.mxu0 %v595
        %625 = vmatpush.msra.mxu0 %v594
        %626 = vmatmul.f32.gmra.mxu0 %v578
        %v627 = vpop.f32.mrf.mxu0
        %v628 = vadd.f32 0.0, %v627
        %629 = vmatmul.f32.gmra.mxu0 %v579
        %v630 = vpop.f32.mrf.mxu0
        %v631 = vadd.f32 0.0, %v630
        %632 = vmatmul.f32.gmra.mxu0 %v580
        %v633 = vpop.f32.mrf.mxu0
        %v634 = vadd.f32 0.0, %v633
        %635 = vmatmul.f32.gmra.mxu0 %v581
        %v636 = vpop.f32.mrf.mxu0
        %v637 = vadd.f32 0.0, %v636
        %638 = vmatmul.f32.gmra.mxu0 %v582
        %v639 = vpop.f32.mrf.mxu0
        %v640 = vadd.f32 0.0, %v639
        %641 = vmatmul.f32.gmra.mxu0 %v583
        %v642 = vpop.f32.mrf.mxu0
        %v643 = vadd.f32 0.0, %v642
        %644 = vmatmul.f32.gmra.mxu0 %v584
        %v645 = vpop.f32.mrf.mxu0
        %v646 = vadd.f32 0.0, %v645
        %647 = vmatmul.f32.gmra.mxu0 %v585
        %v648 = vpop.f32.mrf.mxu0
        %v649 = vadd.f32 0.0, %v648
        %650 = vmatmul.f32.gmra.mxu0 %v586
        %v651 = vpop.f32.mrf.mxu0
        %v652 = vadd.f32 0.0, %v651
        %653 = vmatmul.f32.gmra.mxu0 %v587
        %v654 = vpop.f32.mrf.mxu0
        %v655 = vadd.f32 0.0, %v654
        %656 = vmatmul.f32.gmra.mxu0 %v588
        %v657 = vpop.f32.mrf.mxu0
        %v658 = vadd.f32 0.0, %v657
        %659 = vmatmul.f32.gmra.mxu0 %v589
        %v660 = vpop.f32.mrf.mxu0
        %v661 = vadd.f32 0.0, %v660
        %662 = vmatmul.f32.gmra.mxu0 %v590
        %v663 = vpop.f32.mrf.mxu0
        %v664 = vadd.f32 0.0, %v663
        %665 = vmatmul.f32.gmra.mxu0 %v591
        %v666 = vpop.f32.mrf.mxu0
        %v667 = vadd.f32 0.0, %v666
        %668 = vmatmul.f32.gmra.mxu0 %v592
        %v669 = vpop.f32.mrf.mxu0
        %v670 = vadd.f32 0.0, %v669
        %671 = vmatmul.f32.gmra.mxu0 %v593
        %v672 = vpop.f32.mrf.mxu0
        %v673 = vadd.f32 0.0, %v672
        %674 = vdwg.mxu0
        %v675 = vld [vmem:[%s4] sm:$0x1]
        %v677 = vperm.slane %v675, 0
        %v679 = vadd.f32 %v628, %v677
        %v680 = vadd.f32 %v631, %v677
        %v681 = vadd.f32 %v634, %v677
        %v682 = vadd.f32 %v637, %v677
        %v683 = vadd.f32 %v640, %v677
        %v684 = vadd.f32 %v643, %v677
        %v685 = vadd.f32 %v646, %v677
        %v686 = vadd.f32 %v649, %v677
        %v687 = vadd.f32 %v652, %v677
        %v688 = vadd.f32 %v655, %v677
        %v689 = vadd.f32 %v658, %v677
        %v690 = vadd.f32 %v661, %v677
        %v691 = vadd.f32 %v664, %v677
        %v692 = vadd.f32 %v667, %v677
        %v693 = vadd.f32 %v670, %v677
        %v694 = vadd.f32 %v673, %v677
        %696 = vset.pattern.permute.xlu0 0
        %697 = vperm.xlu0 %696, %v562
        %v698 = vpop.permute.xlu0 %697
        %701 = vset.pattern.permute.xlu0 0
        %702 = vperm.xlu0 %701, %v563
        %v703 = vpop.permute.xlu0 %702
        %706 = vset.pattern.permute.xlu0 0
        %707 = vperm.xlu0 %706, %v564
        %v708 = vpop.permute.xlu0 %707
        %711 = vset.pattern.permute.xlu0 0
        %712 = vperm.xlu0 %711, %v565
        %v713 = vpop.permute.xlu0 %712
        %716 = vset.pattern.permute.xlu0 0
        %717 = vperm.xlu0 %716, %v566
        %v718 = vpop.permute.xlu0 %717
        %721 = vset.pattern.permute.xlu0 0
        %722 = vperm.xlu0 %721, %v567
        %v723 = vpop.permute.xlu0 %722
        %726 = vset.pattern.permute.xlu0 0
        %727 = vperm.xlu0 %726, %v568
        %v728 = vpop.permute.xlu0 %727
        %731 = vset.pattern.permute.xlu0 0
        %732 = vperm.xlu0 %731, %v569
        %v733 = vpop.permute.xlu0 %732
        %736 = vset.pattern.permute.xlu0 0
        %737 = vperm.xlu0 %736, %v570
        %v738 = vpop.permute.xlu0 %737
        %741 = vset.pattern.permute.xlu0 0
        %742 = vperm.xlu0 %741, %v571
        %v743 = vpop.permute.xlu0 %742
        %746 = vset.pattern.permute.xlu0 0
        %747 = vperm.xlu0 %746, %v572
        %v748 = vpop.permute.xlu0 %747
        %751 = vset.pattern.permute.xlu0 0
        %752 = vperm.xlu0 %751, %v573
        %v753 = vpop.permute.xlu0 %752
        %756 = vset.pattern.permute.xlu0 0
        %757 = vperm.xlu0 %756, %v574
        %v758 = vpop.permute.xlu0 %757
        %761 = vset.pattern.permute.xlu0 0
        %762 = vperm.xlu0 %761, %v575
        %v763 = vpop.permute.xlu0 %762
        %766 = vset.pattern.permute.xlu0 0
        %767 = vperm.xlu0 %766, %v576
        %v768 = vpop.permute.xlu0 %767
        %771 = vset.pattern.permute.xlu0 0
        %772 = vperm.xlu0 %771, %v577
        %v773 = vpop.permute.xlu0 %772
        %v775 = vmul.f32 %v679, %v698
        %v776 = vmul.f32 %v680, %v703
        %v777 = vmul.f32 %v681, %v708
        %v778 = vmul.f32 %v682, %v713
        %v779 = vmul.f32 %v683, %v718
        %v780 = vmul.f32 %v684, %v723
        %v781 = vmul.f32 %v685, %v728
        %v782 = vmul.f32 %v686, %v733
        %v783 = vmul.f32 %v687, %v738
        %v784 = vmul.f32 %v688, %v743
        %v785 = vmul.f32 %v689, %v748
        %v786 = vmul.f32 %v690, %v753
        %v787 = vmul.f32 %v691, %v758
        %v788 = vmul.f32 %v692, %v763
        %v789 = vmul.f32 %v693, %v768
        %v790 = vmul.f32 %v694, %v773
        %v791 = vld [vmem:[%s7] sm:$0x1]
        %v792 = vld [vmem:[%s8] sm:$0x1]
        %v793 = vadd.f32 %v775, %v776
        %v794 = vrot.slane %v793, 4
        %v795 = vadd.f32 %v793, %v794
        %v796 = vrot.slane %v795, 2
        %v797 = vadd.f32 %v795, %v796
        %v798 = vrot.slane %v797, 1
        %v799 = vadd.f32 %v797, %v798
        %v800 = vadd.f32 %v777, %v778
        %v801 = vrot.slane %v800, 4
        %v802 = vadd.f32 %v800, %v801
        %v803 = vrot.slane %v802, 2
        %v804 = vadd.f32 %v802, %v803
        %v805 = vrot.slane %v804, 1
        %v806 = vadd.f32 %v804, %v805
        %v807 = vadd.f32 %v779, %v780
        %v808 = vrot.slane %v807, 4
        %v809 = vadd.f32 %v807, %v808
        %v810 = vrot.slane %v809, 2
        %v811 = vadd.f32 %v809, %v810
        %v812 = vrot.slane %v811, 1
        %v813 = vadd.f32 %v811, %v812
        %v814 = vadd.f32 %v781, %v782
        %v815 = vrot.slane %v814, 4
        %v816 = vadd.f32 %v814, %v815
        %v817 = vrot.slane %v816, 2
        %v818 = vadd.f32 %v816, %v817
        %v819 = vrot.slane %v818, 1
        %v820 = vadd.f32 %v818, %v819
        %v821 = vadd.f32 %v783, %v784
        %v822 = vrot.slane %v821, 4
        %v823 = vadd.f32 %v821, %v822
        %v824 = vrot.slane %v823, 2
        %v825 = vadd.f32 %v823, %v824
        %v826 = vrot.slane %v825, 1
        %v827 = vadd.f32 %v825, %v826
        %v828 = vadd.f32 %v785, %v786
        %v829 = vrot.slane %v828, 4
        %v830 = vadd.f32 %v828, %v829
        %v831 = vrot.slane %v830, 2
        %v832 = vadd.f32 %v830, %v831
        %v833 = vrot.slane %v832, 1
        %v834 = vadd.f32 %v832, %v833
        %v835 = vadd.f32 %v787, %v788
        %v836 = vrot.slane %v835, 4
        %v837 = vadd.f32 %v835, %v836
        %v838 = vrot.slane %v837, 2
        %v839 = vadd.f32 %v837, %v838
        %v840 = vrot.slane %v839, 1
        %v841 = vadd.f32 %v839, %v840
        %v842 = vadd.f32 %v789, %v790
        %v843 = vrot.slane %v842, 4
        %v844 = vadd.f32 %v842, %v843
        %v845 = vrot.slane %v844, 2
        %v846 = vadd.f32 %v844, %v845
        %v847 = vrot.slane %v846, 1
        %v848 = vadd.f32 %v846, %v847
        %v849 = vmul.f32 %v775, %v775
        %v850 = vmul.f32 %v776, %v776
        %v851 = vmul.f32 %v777, %v777
        %v852 = vmul.f32 %v778, %v778
        %v853 = vmul.f32 %v779, %v779
        %v854 = vmul.f32 %v780, %v780
        %v855 = vmul.f32 %v781, %v781
        %v856 = vmul.f32 %v782, %v782
        %v857 = vmul.f32 %v783, %v783
        %v858 = vmul.f32 %v784, %v784
        %v859 = vmul.f32 %v785, %v785
        %v860 = vmul.f32 %v786, %v786
        %v861 = vmul.f32 %v787, %v787
        %v862 = vmul.f32 %v788, %v788
        %v863 = vmul.f32 %v789, %v789
        %v864 = vmul.f32 %v790, %v790
        %v865 = vadd.f32 %v849, %v850
        %v866 = vrot.slane %v865, 4
        %v867 = vadd.f32 %v865, %v866
        %v868 = vrot.slane %v867, 2
        %v869 = vadd.f32 %v867, %v868
        %v870 = vrot.slane %v869, 1
        %v871 = vadd.f32 %v869, %v870
        %v872 = vadd.f32 %v851, %v852
        %v873 = vrot.slane %v872, 4
        %v874 = vadd.f32 %v872, %v873
        %v875 = vrot.slane %v874, 2
        %v876 = vadd.f32 %v874, %v875
        %v877 = vrot.slane %v876, 1
        %v878 = vadd.f32 %v876, %v877
        %v879 = vadd.f32 %v853, %v854
        %v880 = vrot.slane %v879, 4
        %v881 = vadd.f32 %v879, %v880
        %v882 = vrot.slane %v881, 2
        %v883 = vadd.f32 %v881, %v882
        %v884 = vrot.slane %v883, 1
        %v885 = vadd.f32 %v883, %v884
        %v886 = vadd.f32 %v855, %v856
        %v887 = vrot.slane %v886, 4
        %v888 = vadd.f32 %v886, %v887
        %v889 = vrot.slane %v888, 2
        %v890 = vadd.f32 %v888, %v889
        %v891 = vrot.slane %v890, 1
        %v892 = vadd.f32 %v890, %v891
        %v893 = vadd.f32 %v857, %v858
        %v894 = vrot.slane %v893, 4
        %v895 = vadd.f32 %v893, %v894
        %v896 = vrot.slane %v895, 2
        %v897 = vadd.f32 %v895, %v896
        %v898 = vrot.slane %v897, 1
        %v899 = vadd.f32 %v897, %v898
        %v900 = vadd.f32 %v859, %v860
        %v901 = vrot.slane %v900, 4
        %v902 = vadd.f32 %v900, %v901
        %v903 = vrot.slane %v902, 2
        %v904 = vadd.f32 %v902, %v903
        %v905 = vrot.slane %v904, 1
        %v906 = vadd.f32 %v904, %v905
        %v907 = vadd.f32 %v861, %v862
        %v908 = vrot.slane %v907, 4
        %v909 = vadd.f32 %v907, %v908
        %v910 = vrot.slane %v909, 2
        %v911 = vadd.f32 %v909, %v910
        %v912 = vrot.slane %v911, 1
        %v913 = vadd.f32 %v911, %v912
        %v914 = vadd.f32 %v863, %v864
        %v915 = vrot.slane %v914, 4
        %v916 = vadd.f32 %v914, %v915
        %v917 = vrot.slane %v916, 2
        %v918 = vadd.f32 %v916, %v917
        %v919 = vrot.slane %v918, 1
        %v920 = vadd.f32 %v918, %v919
        %921 = vset.pattern.permute.xlu0 0
        %922 = vperm.xlu0 %921, %v553
        %v923 = vpop.permute.xlu0 %922
        %v925 = vperm.slane %v923, 0
        %926 = vset.pattern.permute.xlu0 0
        %927 = vperm.xlu0 %926, %v555
        %v928 = vpop.permute.xlu0 %927
        %v930 = vperm.slane %v928, 0
        %931 = vset.pattern.permute.xlu0 0
        %932 = vperm.xlu0 %931, %v556
        %v933 = vpop.permute.xlu0 %932
        %v935 = vperm.slane %v933, 0
        %936 = vset.pattern.permute.xlu0 0
        %937 = vperm.xlu0 %936, %v557
        %v938 = vpop.permute.xlu0 %937
        %v940 = vperm.slane %v938, 0
        %941 = vset.pattern.permute.xlu0 0
        %942 = vperm.xlu0 %941, %v558
        %v943 = vpop.permute.xlu0 %942
        %v945 = vperm.slane %v943, 0
        %946 = vset.pattern.permute.xlu0 0
        %947 = vperm.xlu0 %946, %v559
        %v948 = vpop.permute.xlu0 %947
        %v950 = vperm.slane %v948, 0
        %951 = vset.pattern.permute.xlu0 0
        %952 = vperm.xlu0 %951, %v560
        %v953 = vpop.permute.xlu0 %952
        %v955 = vperm.slane %v953, 0
        %956 = vset.pattern.permute.xlu0 0
        %957 = vperm.xlu0 %956, %v561
        %v958 = vpop.permute.xlu0 %957
        %v960 = vperm.slane %v958, 0
        %v961 = vmul.f32 %v799, %v925
        %v962 = vmul.f32 %v806, %v930
        %v963 = vmul.f32 %v813, %v935
        %v964 = vmul.f32 %v820, %v940
        %v965 = vmul.f32 %v827, %v945
        %v966 = vmul.f32 %v834, %v950
        %v967 = vmul.f32 %v841, %v955
        %v968 = vmul.f32 %v848, %v960
        %v969 = vmul.f32 %v871, %v925
        %v970 = vmul.f32 %v878, %v930
        %v971 = vmul.f32 %v885, %v935
        %v972 = vmul.f32 %v892, %v940
        %v973 = vmul.f32 %v899, %v945
        %v974 = vmul.f32 %v906, %v950
        %v975 = vmul.f32 %v913, %v955
        %v976 = vmul.f32 %v920, %v960
        %v977 = vmul.f32 %v961, %v961
        %v978 = vmul.f32 %v962, %v962
        %v979 = vmul.f32 %v963, %v963
        %v980 = vmul.f32 %v964, %v964
        %v981 = vmul.f32 %v965, %v965
        %v982 = vmul.f32 %v966, %v966
        %v983 = vmul.f32 %v967, %v967
        %v984 = vmul.f32 %v968, %v968
        %v985 = vsub.f32 %v969, %v977
        %v986 = vsub.f32 %v970, %v978
        %v987 = vsub.f32 %v971, %v979
        %v988 = vsub.f32 %v972, %v980
        %v989 = vsub.f32 %v973, %v981
        %v990 = vsub.f32 %v974, %v982
        %v991 = vsub.f32 %v975, %v983
        %v992 = vsub.f32 %v976, %v984
        %v993 = vadd.f32 %v985, 1e-05
        %v994 = vadd.f32 %v986, 1e-05
        %v995 = vadd.f32 %v987, 1e-05
        %v996 = vadd.f32 %v988, 1e-05
        %v997 = vadd.f32 %v989, 1e-05
        %v998 = vadd.f32 %v990, 1e-05
        %v999 = vadd.f32 %v991, 1e-05
        %v1000 = vadd.f32 %v992, 1e-05
        %v1001 = vrsqrt.pop %v993
        %v1002 = vmul.f32 %v1001, %v993
        %v1003 = vmul.f32 %v1002, %v1001
        %v1004 = vmul.f32 0.5, %v1003
        %v1005 = vsub.f32 1.5, %v1004
        %v1006 = vmul.f32 %v1001, %v1005
        %vm1007 = vweird.f32 %v993
        %vm1008 = vweird.f32 %v1001
        %vm1009 = vmor %vm1007, %vm1008
        %v1010 = vsel %vm1009, %v1001, %v1006
        %v1011 = vrsqrt.pop %v994
        %v1012 = vmul.f32 %v1011, %v994
        %v1013 = vmul.f32 %v1012, %v1011
        %v1014 = vmul.f32 0.5, %v1013
        %v1015 = vsub.f32 1.5, %v1014
        %v1016 = vmul.f32 %v1011, %v1015
        %vm1017 = vweird.f32 %v994
        %vm1018 = vweird.f32 %v1011
        %vm1019 = vmor %vm1017, %vm1018
        %v1020 = vsel %vm1019, %v1011, %v1016
        %v1021 = vrsqrt.pop %v995
        %v1022 = vmul.f32 %v1021, %v995
        %v1023 = vmul.f32 %v1022, %v1021
        %v1024 = vmul.f32 0.5, %v1023
        %v1025 = vsub.f32 1.5, %v1024
        %v1026 = vmul.f32 %v1021, %v1025
        %vm1027 = vweird.f32 %v995
        %vm1028 = vweird.f32 %v1021
        %vm1029 = vmor %vm1027, %vm1028
        %v1030 = vsel %vm1029, %v1021, %v1026
        %v1031 = vrsqrt.pop %v996
        %v1032 = vmul.f32 %v1031, %v996
        %v1033 = vmul.f32 %v1032, %v1031
        %v1034 = vmul.f32 0.5, %v1033
        %v1035 = vsub.f32 1.5, %v1034
        %v1036 = vmul.f32 %v1031, %v1035
        %vm1037 = vweird.f32 %v996
        %vm1038 = vweird.f32 %v1031
        %vm1039 = vmor %vm1037, %vm1038
        %v1040 = vsel %vm1039, %v1031, %v1036
        %v1041 = vrsqrt.pop %v997
        %v1042 = vmul.f32 %v1041, %v997
        %v1043 = vmul.f32 %v1042, %v1041
        %v1044 = vmul.f32 0.5, %v1043
        %v1045 = vsub.f32 1.5, %v1044
        %v1046 = vmul.f32 %v1041, %v1045
        %vm1047 = vweird.f32 %v997
        %vm1048 = vweird.f32 %v1041
        %vm1049 = vmor %vm1047, %vm1048
        %v1050 = vsel %vm1049, %v1041, %v1046
        %v1051 = vrsqrt.pop %v998
        %v1052 = vmul.f32 %v1051, %v998
        %v1053 = vmul.f32 %v1052, %v1051
        %v1054 = vmul.f32 0.5, %v1053
        %v1055 = vsub.f32 1.5, %v1054
        %v1056 = vmul.f32 %v1051, %v1055
        %vm1057 = vweird.f32 %v998
        %vm1058 = vweird.f32 %v1051
        %vm1059 = vmor %vm1057, %vm1058
        %v1060 = vsel %vm1059, %v1051, %v1056
        %v1061 = vrsqrt.pop %v999
        %v1062 = vmul.f32 %v1061, %v999
        %v1063 = vmul.f32 %v1062, %v1061
        %v1064 = vmul.f32 0.5, %v1063
        %v1065 = vsub.f32 1.5, %v1064
        %v1066 = vmul.f32 %v1061, %v1065
        %vm1067 = vweird.f32 %v999
        %vm1068 = vweird.f32 %v1061
        %vm1069 = vmor %vm1067, %vm1068
        %v1070 = vsel %vm1069, %v1061, %v1066
        %v1071 = vrsqrt.pop %v1000
        %v1072 = vmul.f32 %v1071, %v1000
        %v1073 = vmul.f32 %v1072, %v1071
        %v1074 = vmul.f32 0.5, %v1073
        %v1075 = vsub.f32 1.5, %v1074
        %v1076 = vmul.f32 %v1071, %v1075
        %vm1077 = vweird.f32 %v1000
        %vm1078 = vweird.f32 %v1071
        %vm1079 = vmor %vm1077, %vm1078
        %v1080 = vsel %vm1079, %v1071, %v1076
        %v1081 = vmul.f32 %v791, %v1010
        %v1082 = vmul.f32 %v791, %v1020
        %v1083 = vmul.f32 %v791, %v1030
        %v1084 = vmul.f32 %v791, %v1040
        %v1085 = vmul.f32 %v791, %v1050
        %v1086 = vmul.f32 %v791, %v1060
        %v1087 = vmul.f32 %v791, %v1070
        %v1088 = vmul.f32 %v791, %v1080
        %v1089 = vmul.f32 %v961, %v1081
        %v1090 = vmul.f32 %v962, %v1082
        %v1091 = vmul.f32 %v963, %v1083
        %v1092 = vmul.f32 %v964, %v1084
        %v1093 = vmul.f32 %v965, %v1085
        %v1094 = vmul.f32 %v966, %v1086
        %v1095 = vmul.f32 %v967, %v1087
        %v1096 = vmul.f32 %v968, %v1088
        %v1097 = vsub.f32 %v792, %v1089
        %v1098 = vsub.f32 %v792, %v1090
        %v1099 = vsub.f32 %v792, %v1091
        %v1100 = vsub.f32 %v792, %v1092
        %v1101 = vsub.f32 %v792, %v1093
        %v1102 = vsub.f32 %v792, %v1094
        %v1103 = vsub.f32 %v792, %v1095
        %v1104 = vsub.f32 %v792, %v1096
        %v1113 = vperm.slane %v1081, 0
        %v1114 = vperm.slane %v1082, 0
        %v1115 = vperm.slane %v1083, 0
        %v1116 = vperm.slane %v1084, 0
        %v1117 = vperm.slane %v1085, 0
        %v1118 = vperm.slane %v1086, 0
        %v1119 = vperm.slane %v1087, 0
        %v1120 = vperm.slane %v1088, 0
        %v1129 = vmul.f32 %v775, %v1113
        %v1130 = vmul.f32 %v776, %v1113
        %v1131 = vmul.f32 %v777, %v1114
        %v1132 = vmul.f32 %v778, %v1114
        %v1133 = vmul.f32 %v779, %v1115
        %v1134 = vmul.f32 %v780, %v1115
        %v1135 = vmul.f32 %v781, %v1116
        %v1136 = vmul.f32 %v782, %v1116
        %v1137 = vmul.f32 %v783, %v1117
        %v1138 = vmul.f32 %v784, %v1117
        %v1139 = vmul.f32 %v785, %v1118
        %v1140 = vmul.f32 %v786, %v1118
        %v1141 = vmul.f32 %v787, %v1119
        %v1142 = vmul.f32 %v788, %v1119
        %v1143 = vmul.f32 %v789, %v1120
        %v1144 = vmul.f32 %v790, %v1120
        %v1153 = vperm.slane %v1097, 0
        %v1154 = vperm.slane %v1098, 0
        %v1155 = vperm.slane %v1099, 0
        %v1156 = vperm.slane %v1100, 0
        %v1157 = vperm.slane %v1101, 0
        %v1158 = vperm.slane %v1102, 0
        %v1159 = vperm.slane %v1103, 0
        %v1160 = vperm.slane %v1104, 0
        %v1169 = vadd.f32 %v1129, %v1153
        %v1170 = vadd.f32 %v1130, %v1153
        %v1171 = vadd.f32 %v1131, %v1154
        %v1172 = vadd.f32 %v1132, %v1154
        %v1173 = vadd.f32 %v1133, %v1155
        %v1174 = vadd.f32 %v1134, %v1155
        %v1175 = vadd.f32 %v1135, %v1156
        %v1176 = vadd.f32 %v1136, %v1156
        %v1177 = vadd.f32 %v1137, %v1157
        %v1178 = vadd.f32 %v1138, %v1157
        %v1179 = vadd.f32 %v1139, %v1158
        %v1180 = vadd.f32 %v1140, %v1158
        %v1181 = vadd.f32 %v1141, %v1159
        %v1182 = vadd.f32 %v1142, %v1159
        %v1183 = vadd.f32 %v1143, %v1160
        %v1184 = vadd.f32 %v1144, %v1160
        %v1185 = vmax.f32 %v1169, 0.0
        %v1186 = vmax.f32 %v1170, 0.0
        %v1187 = vmax.f32 %v1171, 0.0
        %v1188 = vmax.f32 %v1172, 0.0
        %v1189 = vmax.f32 %v1173, 0.0
        %v1190 = vmax.f32 %v1174, 0.0
        %v1191 = vmax.f32 %v1175, 0.0
        %v1192 = vmax.f32 %v1176, 0.0
        %v1193 = vmax.f32 %v1177, 0.0
        %v1194 = vmax.f32 %v1178, 0.0
        %v1195 = vmax.f32 %v1179, 0.0
        %v1196 = vmax.f32 %v1180, 0.0
        %v1197 = vmax.f32 %v1181, 0.0
        %v1198 = vmax.f32 %v1182, 0.0
        %v1199 = vmax.f32 %v1183, 0.0
        %v1200 = vmax.f32 %v1184, 0.0
        %v1201 = vld [vmem:[#allocation6] sm:$0xff]
        %v1202 = vld [vmem:[#allocation6 + $0x8] sm:$0xff]
        %v1203 = vld [vmem:[#allocation6 + $0x10] sm:$0xff]
        %v1204 = vld [vmem:[#allocation6 + $0x18] sm:$0xff]
        %v1205 = vld [vmem:[#allocation6 + $0x20] sm:$0xff]
        %v1206 = vld [vmem:[#allocation6 + $0x28] sm:$0xff]
        %v1207 = vld [vmem:[#allocation6 + $0x30] sm:$0xff]
        %v1208 = vld [vmem:[#allocation6 + $0x38] sm:$0xff]
        %v1209 = vld [vmem:[#allocation6 + $0x40] sm:$0xff]
        %v1210 = vld [vmem:[#allocation6 + $0x48] sm:$0xff]
        %v1211 = vld [vmem:[#allocation6 + $0x50] sm:$0xff]
        %v1212 = vld [vmem:[#allocation6 + $0x58] sm:$0xff]
        %v1213 = vld [vmem:[#allocation6 + $0x60] sm:$0xff]
        %v1214 = vld [vmem:[#allocation6 + $0x68] sm:$0xff]
        %v1215 = vld [vmem:[#allocation6 + $0x70] sm:$0xff]
        %v1216 = vld [vmem:[#allocation6 + $0x78] sm:$0xff]
        %1217 = vmatpush.msra.mxu0 %v1216
        %1218 = vmatpush.msra.mxu0 %v1215
        %1219 = vmatpush.msra.mxu0 %v1214
        %1220 = vmatpush.msra.mxu0 %v1213
        %1221 = vmatpush.msra.mxu0 %v1212
        %1222 = vmatpush.msra.mxu0 %v1211
        %1223 = vmatpush.msra.mxu0 %v1210
        %1224 = vmatpush.msra.mxu0 %v1209
        %1225 = vmatpush.msra.mxu0 %v1208
        %1226 = vmatpush.msra.mxu0 %v1207
        %1227 = vmatpush.msra.mxu0 %v1206
        %1228 = vmatpush.msra.mxu0 %v1205
        %1229 = vmatpush.msra.mxu0 %v1204
        %1230 = vmatpush.msra.mxu0 %v1203
        %1231 = vmatpush.msra.mxu0 %v1202
        %1232 = vmatpush.msra.mxu0 %v1201
        %1233 = vmatmul.f32.gmra.mxu0 %v1185
        %v1234 = vpop.f32.mrf.mxu0
        %v1235 = vadd.f32 0.0, %v1234
        %1236 = vmatmul.f32.gmra.mxu0 %v1186
        %v1237 = vpop.f32.mrf.mxu0
        %v1238 = vadd.f32 0.0, %v1237
        %1239 = vmatmul.f32.gmra.mxu0 %v1187
        %v1240 = vpop.f32.mrf.mxu0
        %v1241 = vadd.f32 0.0, %v1240
        %1242 = vmatmul.f32.gmra.mxu0 %v1188
        %v1243 = vpop.f32.mrf.mxu0
        %v1244 = vadd.f32 0.0, %v1243
        %1245 = vmatmul.f32.gmra.mxu0 %v1189
        %v1246 = vpop.f32.mrf.mxu0
        %v1247 = vadd.f32 0.0, %v1246
        %1248 = vmatmul.f32.gmra.mxu0 %v1190
        %v1249 = vpop.f32.mrf.mxu0
        %v1250 = vadd.f32 0.0, %v1249
        %1251 = vmatmul.f32.gmra.mxu0 %v1191
        %v1252 = vpop.f32.mrf.mxu0
        %v1253 = vadd.f32 0.0, %v1252
        %1254 = vmatmul.f32.gmra.mxu0 %v1192
        %v1255 = vpop.f32.mrf.mxu0
        %v1256 = vadd.f32 0.0, %v1255
        %1257 = vmatmul.f32.gmra.mxu0 %v1193
        %v1258 = vpop.f32.mrf.mxu0
        %v1259 = vadd.f32 0.0, %v1258
        %1260 = vmatmul.f32.gmra.mxu0 %v1194
        %v1261 = vpop.f32.mrf.mxu0
        %v1262 = vadd.f32 0.0, %v1261
        %1263 = vmatmul.f32.gmra.mxu0 %v1195
        %v1264 = vpop.f32.mrf.mxu0
        %v1265 = vadd.f32 0.0, %v1264
        %1266 = vmatmul.f32.gmra.mxu0 %v1196
        %v1267 = vpop.f32.mrf.mxu0
        %v1268 = vadd.f32 0.0, %v1267
        %1269 = vmatmul.f32.gmra.mxu0 %v1197
        %v1270 = vpop.f32.mrf.mxu0
        %v1271 = vadd.f32 0.0, %v1270
        %1272 = vmatmul.f32.gmra.mxu0 %v1198
        %v1273 = vpop.f32.mrf.mxu0
        %v1274 = vadd.f32 0.0, %v1273
        %1275 = vmatmul.f32.gmra.mxu0 %v1199
        %v1276 = vpop.f32.mrf.mxu0
        %v1277 = vadd.f32 0.0, %v1276
        %1278 = vmatmul.f32.gmra.mxu0 %v1200
        %v1279 = vpop.f32.mrf.mxu0
        %v1280 = vadd.f32 0.0, %v1279
        %1281 = vdwg.mxu0
        %v1282 = vld [vmem:[%s6] sm:$0x1]
        %v1284 = vperm.slane %v1282, 0
        %v1286 = vadd.f32 %v1235, %v1284
        %v1287 = vadd.f32 %v1238, %v1284
        %v1288 = vadd.f32 %v1241, %v1284
        %v1289 = vadd.f32 %v1244, %v1284
        %v1290 = vadd.f32 %v1247, %v1284
        %v1291 = vadd.f32 %v1250, %v1284
        %v1292 = vadd.f32 %v1253, %v1284
        %v1293 = vadd.f32 %v1256, %v1284
        %v1294 = vadd.f32 %v1259, %v1284
        %v1295 = vadd.f32 %v1262, %v1284
        %v1296 = vadd.f32 %v1265, %v1284
        %v1297 = vadd.f32 %v1268, %v1284
        %v1298 = vadd.f32 %v1271, %v1284
        %v1299 = vadd.f32 %v1274, %v1284
        %v1300 = vadd.f32 %v1277, %v1284
        %v1301 = vadd.f32 %v1280, %v1284
        %v1302 = vmul.f32 %v1286, %v698
        %v1303 = vmul.f32 %v1287, %v703
        %v1304 = vmul.f32 %v1288, %v708
        %v1305 = vmul.f32 %v1289, %v713
        %v1306 = vmul.f32 %v1290, %v718
        %v1307 = vmul.f32 %v1291, %v723
        %v1308 = vmul.f32 %v1292, %v728
        %v1309 = vmul.f32 %v1293, %v733
        %v1310 = vmul.f32 %v1294, %v738
        %v1311 = vmul.f32 %v1295, %v743
        %v1312 = vmul.f32 %v1296, %v748
        %v1313 = vmul.f32 %v1297, %v753
        %v1314 = vmul.f32 %v1298, %v758
        %v1315 = vmul.f32 %v1299, %v763
        %v1316 = vmul.f32 %v1300, %v768
        %v1317 = vmul.f32 %v1301, %v773
        %s1318 = scalar_lea.vmem %s7, 1
        %v1319 = vld [vmem:[%s1318] sm:$0x1]
        %s1320 = scalar_lea.vmem %s8, 1
        %v1321 = vld [vmem:[%s1320] sm:$0x1]
        %v1322 = vadd.f32 %v1302, %v1303
        %v1323 = vrot.slane %v1322, 4
        %v1324 = vadd.f32 %v1322, %v1323
        %v1325 = vrot.slane %v1324, 2
        %v1326 = vadd.f32 %v1324, %v1325
        %v1327 = vrot.slane %v1326, 1
        %v1328 = vadd.f32 %v1326, %v1327
        %v1329 = vadd.f32 %v1304, %v1305
        %v1330 = vrot.slane %v1329, 4
        %v1331 = vadd.f32 %v1329, %v1330
        %v1332 = vrot.slane %v1331, 2
        %v1333 = vadd.f32 %v1331, %v1332
        %v1334 = vrot.slane %v1333, 1
        %v1335 = vadd.f32 %v1333, %v1334
        %v1336 = vadd.f32 %v1306, %v1307
        %v1337 = vrot.slane %v1336, 4
        %v1338 = vadd.f32 %v1336, %v1337
        %v1339 = vrot.slane %v1338, 2
        %v1340 = vadd.f32 %v1338, %v1339
        %v1341 = vrot.slane %v1340, 1
        %v1342 = vadd.f32 %v1340, %v1341
        %v1343 = vadd.f32 %v1308, %v1309
        %v1344 = vrot.slane %v1343, 4
        %v1345 = vadd.f32 %v1343, %v1344
        %v1346 = vrot.slane %v1345, 2
        %v1347 = vadd.f32 %v1345, %v1346
        %v1348 = vrot.slane %v1347, 1
        %v1349 = vadd.f32 %v1347, %v1348
        %v1350 = vadd.f32 %v1310, %v1311
        %v1351 = vrot.slane %v1350, 4
        %v1352 = vadd.f32 %v1350, %v1351
        %v1353 = vrot.slane %v1352, 2
        %v1354 = vadd.f32 %v1352, %v1353
        %v1355 = vrot.slane %v1354, 1
        %v1356 = vadd.f32 %v1354, %v1355
        %v1357 = vadd.f32 %v1312, %v1313
        %v1358 = vrot.slane %v1357, 4
        %v1359 = vadd.f32 %v1357, %v1358
        %v1360 = vrot.slane %v1359, 2
        %v1361 = vadd.f32 %v1359, %v1360
        %v1362 = vrot.slane %v1361, 1
        %v1363 = vadd.f32 %v1361, %v1362
        %v1364 = vadd.f32 %v1314, %v1315
        %v1365 = vrot.slane %v1364, 4
        %v1366 = vadd.f32 %v1364, %v1365
        %v1367 = vrot.slane %v1366, 2
        %v1368 = vadd.f32 %v1366, %v1367
        %v1369 = vrot.slane %v1368, 1
        %v1370 = vadd.f32 %v1368, %v1369
        %v1371 = vadd.f32 %v1316, %v1317
        %v1372 = vrot.slane %v1371, 4
        %v1373 = vadd.f32 %v1371, %v1372
        %v1374 = vrot.slane %v1373, 2
        %v1375 = vadd.f32 %v1373, %v1374
        %v1376 = vrot.slane %v1375, 1
        %v1377 = vadd.f32 %v1375, %v1376
        %v1378 = vmul.f32 %v1302, %v1302
        %v1379 = vmul.f32 %v1303, %v1303
        %v1380 = vmul.f32 %v1304, %v1304
        %v1381 = vmul.f32 %v1305, %v1305
        %v1382 = vmul.f32 %v1306, %v1306
        %v1383 = vmul.f32 %v1307, %v1307
        %v1384 = vmul.f32 %v1308, %v1308
        %v1385 = vmul.f32 %v1309, %v1309
        %v1386 = vmul.f32 %v1310, %v1310
        %v1387 = vmul.f32 %v1311, %v1311
        %v1388 = vmul.f32 %v1312, %v1312
        %v1389 = vmul.f32 %v1313, %v1313
        %v1390 = vmul.f32 %v1314, %v1314
        %v1391 = vmul.f32 %v1315, %v1315
        %v1392 = vmul.f32 %v1316, %v1316
        %v1393 = vmul.f32 %v1317, %v1317
        %v1394 = vadd.f32 %v1378, %v1379
        %v1395 = vrot.slane %v1394, 4
        %v1396 = vadd.f32 %v1394, %v1395
        %v1397 = vrot.slane %v1396, 2
        %v1398 = vadd.f32 %v1396, %v1397
        %v1399 = vrot.slane %v1398, 1
        %v1400 = vadd.f32 %v1398, %v1399
        %v1401 = vadd.f32 %v1380, %v1381
        %v1402 = vrot.slane %v1401, 4
        %v1403 = vadd.f32 %v1401, %v1402
        %v1404 = vrot.slane %v1403, 2
        %v1405 = vadd.f32 %v1403, %v1404
        %v1406 = vrot.slane %v1405, 1
        %v1407 = vadd.f32 %v1405, %v1406
        %v1408 = vadd.f32 %v1382, %v1383
        %v1409 = vrot.slane %v1408, 4
        %v1410 = vadd.f32 %v1408, %v1409
        %v1411 = vrot.slane %v1410, 2
        %v1412 = vadd.f32 %v1410, %v1411
        %v1413 = vrot.slane %v1412, 1
        %v1414 = vadd.f32 %v1412, %v1413
        %v1415 = vadd.f32 %v1384, %v1385
        %v1416 = vrot.slane %v1415, 4
        %v1417 = vadd.f32 %v1415, %v1416
        %v1418 = vrot.slane %v1417, 2
        %v1419 = vadd.f32 %v1417, %v1418
        %v1420 = vrot.slane %v1419, 1
        %v1421 = vadd.f32 %v1419, %v1420
        %v1422 = vadd.f32 %v1386, %v1387
        %v1423 = vrot.slane %v1422, 4
        %v1424 = vadd.f32 %v1422, %v1423
        %v1425 = vrot.slane %v1424, 2
        %v1426 = vadd.f32 %v1424, %v1425
        %v1427 = vrot.slane %v1426, 1
        %v1428 = vadd.f32 %v1426, %v1427
        %v1429 = vadd.f32 %v1388, %v1389
        %v1430 = vrot.slane %v1429, 4
        %v1431 = vadd.f32 %v1429, %v1430
        %v1432 = vrot.slane %v1431, 2
        %v1433 = vadd.f32 %v1431, %v1432
        %v1434 = vrot.slane %v1433, 1
        %v1435 = vadd.f32 %v1433, %v1434
        %v1436 = vadd.f32 %v1390, %v1391
        %v1437 = vrot.slane %v1436, 4
        %v1438 = vadd.f32 %v1436, %v1437
        %v1439 = vrot.slane %v1438, 2
        %v1440 = vadd.f32 %v1438, %v1439
        %v1441 = vrot.slane %v1440, 1
        %v1442 = vadd.f32 %v1440, %v1441
        %v1443 = vadd.f32 %v1392, %v1393
        %v1444 = vrot.slane %v1443, 4
        %v1445 = vadd.f32 %v1443, %v1444
        %v1446 = vrot.slane %v1445, 2
        %v1447 = vadd.f32 %v1445, %v1446
        %v1448 = vrot.slane %v1447, 1
        %v1449 = vadd.f32 %v1447, %v1448
        %v1450 = vmul.f32 %v1328, %v925
        %v1451 = vmul.f32 %v1335, %v930
        %v1452 = vmul.f32 %v1342, %v935
        %v1453 = vmul.f32 %v1349, %v940
        %v1454 = vmul.f32 %v1356, %v945
        %v1455 = vmul.f32 %v1363, %v950
        %v1456 = vmul.f32 %v1370, %v955
        %v1457 = vmul.f32 %v1377, %v960
        %v1458 = vmul.f32 %v1400, %v925
        %v1459 = vmul.f32 %v1407, %v930
        %v1460 = vmul.f32 %v1414, %v935
        %v1461 = vmul.f32 %v1421, %v940
        %v1462 = vmul.f32 %v1428, %v945
        %v1463 = vmul.f32 %v1435, %v950
        %v1464 = vmul.f32 %v1442, %v955
        %v1465 = vmul.f32 %v1449, %v960
        %v1466 = vmul.f32 %v1450, %v1450
        %v1467 = vmul.f32 %v1451, %v1451
        %v1468 = vmul.f32 %v1452, %v1452
        %v1469 = vmul.f32 %v1453, %v1453
        %v1470 = vmul.f32 %v1454, %v1454
        %v1471 = vmul.f32 %v1455, %v1455
        %v1472 = vmul.f32 %v1456, %v1456
        %v1473 = vmul.f32 %v1457, %v1457
        %v1474 = vsub.f32 %v1458, %v1466
        %v1475 = vsub.f32 %v1459, %v1467
        %v1476 = vsub.f32 %v1460, %v1468
        %v1477 = vsub.f32 %v1461, %v1469
        %v1478 = vsub.f32 %v1462, %v1470
        %v1479 = vsub.f32 %v1463, %v1471
        %v1480 = vsub.f32 %v1464, %v1472
        %v1481 = vsub.f32 %v1465, %v1473
        %v1482 = vadd.f32 %v1474, 1e-05
        %v1483 = vadd.f32 %v1475, 1e-05
        %v1484 = vadd.f32 %v1476, 1e-05
        %v1485 = vadd.f32 %v1477, 1e-05
        %v1486 = vadd.f32 %v1478, 1e-05
        %v1487 = vadd.f32 %v1479, 1e-05
        %v1488 = vadd.f32 %v1480, 1e-05
        %v1489 = vadd.f32 %v1481, 1e-05
        %v1490 = vrsqrt.pop %v1482
        %v1491 = vmul.f32 %v1490, %v1482
        %v1492 = vmul.f32 %v1491, %v1490
        %v1493 = vmul.f32 0.5, %v1492
        %v1494 = vsub.f32 1.5, %v1493
        %v1495 = vmul.f32 %v1490, %v1494
        %vm1496 = vweird.f32 %v1482
        %vm1497 = vweird.f32 %v1490
        %vm1498 = vmor %vm1496, %vm1497
        %v1499 = vsel %vm1498, %v1490, %v1495
        %v1500 = vrsqrt.pop %v1483
        %v1501 = vmul.f32 %v1500, %v1483
        %v1502 = vmul.f32 %v1501, %v1500
        %v1503 = vmul.f32 0.5, %v1502
        %v1504 = vsub.f32 1.5, %v1503
        %v1505 = vmul.f32 %v1500, %v1504
        %vm1506 = vweird.f32 %v1483
        %vm1507 = vweird.f32 %v1500
        %vm1508 = vmor %vm1506, %vm1507
        %v1509 = vsel %vm1508, %v1500, %v1505
        %v1510 = vrsqrt.pop %v1484
        %v1511 = vmul.f32 %v1510, %v1484
        %v1512 = vmul.f32 %v1511, %v1510
        %v1513 = vmul.f32 0.5, %v1512
        %v1514 = vsub.f32 1.5, %v1513
        %v1515 = vmul.f32 %v1510, %v1514
        %vm1516 = vweird.f32 %v1484
        %vm1517 = vweird.f32 %v1510
        %vm1518 = vmor %vm1516, %vm1517
        %v1519 = vsel %vm1518, %v1510, %v1515
        %v1520 = vrsqrt.pop %v1485
        %v1521 = vmul.f32 %v1520, %v1485
        %v1522 = vmul.f32 %v1521, %v1520
        %v1523 = vmul.f32 0.5, %v1522
        %v1524 = vsub.f32 1.5, %v1523
        %v1525 = vmul.f32 %v1520, %v1524
        %vm1526 = vweird.f32 %v1485
        %vm1527 = vweird.f32 %v1520
        %vm1528 = vmor %vm1526, %vm1527
        %v1529 = vsel %vm1528, %v1520, %v1525
        %v1530 = vrsqrt.pop %v1486
        %v1531 = vmul.f32 %v1530, %v1486
        %v1532 = vmul.f32 %v1531, %v1530
        %v1533 = vmul.f32 0.5, %v1532
        %v1534 = vsub.f32 1.5, %v1533
        %v1535 = vmul.f32 %v1530, %v1534
        %vm1536 = vweird.f32 %v1486
        %vm1537 = vweird.f32 %v1530
        %vm1538 = vmor %vm1536, %vm1537
        %v1539 = vsel %vm1538, %v1530, %v1535
        %v1540 = vrsqrt.pop %v1487
        %v1541 = vmul.f32 %v1540, %v1487
        %v1542 = vmul.f32 %v1541, %v1540
        %v1543 = vmul.f32 0.5, %v1542
        %v1544 = vsub.f32 1.5, %v1543
        %v1545 = vmul.f32 %v1540, %v1544
        %vm1546 = vweird.f32 %v1487
        %vm1547 = vweird.f32 %v1540
        %vm1548 = vmor %vm1546, %vm1547
        %v1549 = vsel %vm1548, %v1540, %v1545
        %v1550 = vrsqrt.pop %v1488
        %v1551 = vmul.f32 %v1550, %v1488
        %v1552 = vmul.f32 %v1551, %v1550
        %v1553 = vmul.f32 0.5, %v1552
        %v1554 = vsub.f32 1.5, %v1553
        %v1555 = vmul.f32 %v1550, %v1554
        %vm1556 = vweird.f32 %v1488
        %vm1557 = vweird.f32 %v1550
        %vm1558 = vmor %vm1556, %vm1557
        %v1559 = vsel %vm1558, %v1550, %v1555
        %v1560 = vrsqrt.pop %v1489
        %v1561 = vmul.f32 %v1560, %v1489
        %v1562 = vmul.f32 %v1561, %v1560
        %v1563 = vmul.f32 0.5, %v1562
        %v1564 = vsub.f32 1.5, %v1563
        %v1565 = vmul.f32 %v1560, %v1564
        %vm1566 = vweird.f32 %v1489
        %vm1567 = vweird.f32 %v1560
        %vm1568 = vmor %vm1566, %vm1567
        %v1569 = vsel %vm1568, %v1560, %v1565
        %v1570 = vmul.f32 %v1319, %v1499
        %v1571 = vmul.f32 %v1319, %v1509
        %v1572 = vmul.f32 %v1319, %v1519
        %v1573 = vmul.f32 %v1319, %v1529
        %v1574 = vmul.f32 %v1319, %v1539
        %v1575 = vmul.f32 %v1319, %v1549
        %v1576 = vmul.f32 %v1319, %v1559
        %v1577 = vmul.f32 %v1319, %v1569
        %v1578 = vmul.f32 %v1450, %v1570
        %v1579 = vmul.f32 %v1451, %v1571
        %v1580 = vmul.f32 %v1452, %v1572
        %v1581 = vmul.f32 %v1453, %v1573
        %v1582 = vmul.f32 %v1454, %v1574
        %v1583 = vmul.f32 %v1455, %v1575
        %v1584 = vmul.f32 %v1456, %v1576
        %v1585 = vmul.f32 %v1457, %v1577
        %v1586 = vsub.f32 %v1321, %v1578
        %v1587 = vsub.f32 %v1321, %v1579
        %v1588 = vsub.f32 %v1321, %v1580
        %v1589 = vsub.f32 %v1321, %v1581
        %v1590 = vsub.f32 %v1321, %v1582
        %v1591 = vsub.f32 %v1321, %v1583
        %v1592 = vsub.f32 %v1321, %v1584
        %v1593 = vsub.f32 %v1321, %v1585
        %v1602 = vperm.slane %v1570, 0
        %v1603 = vperm.slane %v1571, 0
        %v1604 = vperm.slane %v1572, 0
        %v1605 = vperm.slane %v1573, 0
        %v1606 = vperm.slane %v1574, 0
        %v1607 = vperm.slane %v1575, 0
        %v1608 = vperm.slane %v1576, 0
        %v1609 = vperm.slane %v1577, 0
        %v1618 = vmul.f32 %v1302, %v1602
        %v1619 = vmul.f32 %v1303, %v1602
        %v1620 = vmul.f32 %v1304, %v1603
        %v1621 = vmul.f32 %v1305, %v1603
        %v1622 = vmul.f32 %v1306, %v1604
        %v1623 = vmul.f32 %v1307, %v1604
        %v1624 = vmul.f32 %v1308, %v1605
        %v1625 = vmul.f32 %v1309, %v1605
        %v1626 = vmul.f32 %v1310, %v1606
        %v1627 = vmul.f32 %v1311, %v1606
        %v1628 = vmul.f32 %v1312, %v1607
        %v1629 = vmul.f32 %v1313, %v1607
        %v1630 = vmul.f32 %v1314, %v1608
        %v1631 = vmul.f32 %v1315, %v1608
        %v1632 = vmul.f32 %v1316, %v1609
        %v1633 = vmul.f32 %v1317, %v1609
        %v1642 = vperm.slane %v1586, 0
        %v1643 = vperm.slane %v1587, 0
        %v1644 = vperm.slane %v1588, 0
        %v1645 = vperm.slane %v1589, 0
        %v1646 = vperm.slane %v1590, 0
        %v1647 = vperm.slane %v1591, 0
        %v1648 = vperm.slane %v1592, 0
        %v1649 = vperm.slane %v1593, 0
        %v1658 = vadd.f32 %v1618, %v1642
        %v1659 = vadd.f32 %v1619, %v1642
        %v1660 = vadd.f32 %v1620, %v1643
        %v1661 = vadd.f32 %v1621, %v1643
        %v1662 = vadd.f32 %v1622, %v1644
        %v1663 = vadd.f32 %v1623, %v1644
        %v1664 = vadd.f32 %v1624, %v1645
        %v1665 = vadd.f32 %v1625, %v1645
        %v1666 = vadd.f32 %v1626, %v1646
        %v1667 = vadd.f32 %v1627, %v1646
        %v1668 = vadd.f32 %v1628, %v1647
        %v1669 = vadd.f32 %v1629, %v1647
        %v1670 = vadd.f32 %v1630, %v1648
        %v1671 = vadd.f32 %v1631, %v1648
        %v1672 = vadd.f32 %v1632, %v1649
        %v1673 = vadd.f32 %v1633, %v1649
        %v1674 = vmax.f32 %v1658, 0.0
        %v1675 = vmax.f32 %v1659, 0.0
        %v1676 = vmax.f32 %v1660, 0.0
        %v1677 = vmax.f32 %v1661, 0.0
        %v1678 = vmax.f32 %v1662, 0.0
        %v1679 = vmax.f32 %v1663, 0.0
        %v1680 = vmax.f32 %v1664, 0.0
        %v1681 = vmax.f32 %v1665, 0.0
        %v1682 = vmax.f32 %v1666, 0.0
        %v1683 = vmax.f32 %v1667, 0.0
        %v1684 = vmax.f32 %v1668, 0.0
        %v1685 = vmax.f32 %v1669, 0.0
        %v1686 = vmax.f32 %v1670, 0.0
        %v1687 = vmax.f32 %v1671, 0.0
        %v1688 = vmax.f32 %v1672, 0.0
        %v1689 = vmax.f32 %v1673, 0.0
        %s1690 = scalar_lea.vmem [#allocation6], 128
        %v1691 = vld [vmem:[%s1690] sm:$0xff]
        %v1692 = vld [vmem:[%s1690 + $0x8] sm:$0xff]
        %v1693 = vld [vmem:[%s1690 + $0x10] sm:$0xff]
        %v1694 = vld [vmem:[%s1690 + $0x18] sm:$0xff]
        %v1695 = vld [vmem:[%s1690 + $0x20] sm:$0xff]
        %v1696 = vld [vmem:[%s1690 + $0x28] sm:$0xff]
        %v1697 = vld [vmem:[%s1690 + $0x30] sm:$0xff]
        %v1698 = vld [vmem:[%s1690 + $0x38] sm:$0xff]
        %v1699 = vld [vmem:[%s1690 + $0x40] sm:$0xff]
        %v1700 = vld [vmem:[%s1690 + $0x48] sm:$0xff]
        %v1701 = vld [vmem:[%s1690 + $0x50] sm:$0xff]
        %v1702 = vld [vmem:[%s1690 + $0x58] sm:$0xff]
        %v1703 = vld [vmem:[%s1690 + $0x60] sm:$0xff]
        %v1704 = vld [vmem:[%s1690 + $0x68] sm:$0xff]
        %v1705 = vld [vmem:[%s1690 + $0x70] sm:$0xff]
        %v1706 = vld [vmem:[%s1690 + $0x78] sm:$0xff]
        %1707 = vmatpush.msra.mxu0 %v1706
        %1708 = vmatpush.msra.mxu0 %v1705
        %1709 = vmatpush.msra.mxu0 %v1704
        %1710 = vmatpush.msra.mxu0 %v1703
        %1711 = vmatpush.msra.mxu0 %v1702
        %1712 = vmatpush.msra.mxu0 %v1701
        %1713 = vmatpush.msra.mxu0 %v1700
        %1714 = vmatpush.msra.mxu0 %v1699
        %1715 = vmatpush.msra.mxu0 %v1698
        %1716 = vmatpush.msra.mxu0 %v1697
        %1717 = vmatpush.msra.mxu0 %v1696
        %1718 = vmatpush.msra.mxu0 %v1695
        %1719 = vmatpush.msra.mxu0 %v1694
        %1720 = vmatpush.msra.mxu0 %v1693
        %1721 = vmatpush.msra.mxu0 %v1692
        %1722 = vmatpush.msra.mxu0 %v1691
        %1723 = vmatmul.f32.gmra.mxu0 %v1674
        %v1724 = vpop.f32.mrf.mxu0
        %v1725 = vadd.f32 0.0, %v1724
        %1726 = vmatmul.f32.gmra.mxu0 %v1675
        %v1727 = vpop.f32.mrf.mxu0
        %v1728 = vadd.f32 0.0, %v1727
        %1729 = vmatmul.f32.gmra.mxu0 %v1676
        %v1730 = vpop.f32.mrf.mxu0
        %v1731 = vadd.f32 0.0, %v1730
        %1732 = vmatmul.f32.gmra.mxu0 %v1677
        %v1733 = vpop.f32.mrf.mxu0
        %v1734 = vadd.f32 0.0, %v1733
        %1735 = vmatmul.f32.gmra.mxu0 %v1678
        %v1736 = vpop.f32.mrf.mxu0
        %v1737 = vadd.f32 0.0, %v1736
        %1738 = vmatmul.f32.gmra.mxu0 %v1679
        %v1739 = vpop.f32.mrf.mxu0
        %v1740 = vadd.f32 0.0, %v1739
        %1741 = vmatmul.f32.gmra.mxu0 %v1680
        %v1742 = vpop.f32.mrf.mxu0
        %v1743 = vadd.f32 0.0, %v1742
        %1744 = vmatmul.f32.gmra.mxu0 %v1681
        %v1745 = vpop.f32.mrf.mxu0
        %v1746 = vadd.f32 0.0, %v1745
        %1747 = vmatmul.f32.gmra.mxu0 %v1682
        %v1748 = vpop.f32.mrf.mxu0
        %v1749 = vadd.f32 0.0, %v1748
        %1750 = vmatmul.f32.gmra.mxu0 %v1683
        %v1751 = vpop.f32.mrf.mxu0
        %v1752 = vadd.f32 0.0, %v1751
        %1753 = vmatmul.f32.gmra.mxu0 %v1684
        %v1754 = vpop.f32.mrf.mxu0
        %v1755 = vadd.f32 0.0, %v1754
        %1756 = vmatmul.f32.gmra.mxu0 %v1685
        %v1757 = vpop.f32.mrf.mxu0
        %v1758 = vadd.f32 0.0, %v1757
        %1759 = vmatmul.f32.gmra.mxu0 %v1686
        %v1760 = vpop.f32.mrf.mxu0
        %v1761 = vadd.f32 0.0, %v1760
        %1762 = vmatmul.f32.gmra.mxu0 %v1687
        %v1763 = vpop.f32.mrf.mxu0
        %v1764 = vadd.f32 0.0, %v1763
        %1765 = vmatmul.f32.gmra.mxu0 %v1688
        %v1766 = vpop.f32.mrf.mxu0
        %v1767 = vadd.f32 0.0, %v1766
        %1768 = vmatmul.f32.gmra.mxu0 %v1689
        %v1769 = vpop.f32.mrf.mxu0
        %v1770 = vadd.f32 0.0, %v1769
        %1771 = vdwg.mxu0
        %s1772 = scalar_lea.vmem %s6, 1
        %v1773 = vld [vmem:[%s1772] sm:$0x1]
        %v1775 = vperm.slane %v1773, 0
        %v1777 = vadd.f32 %v1725, %v1775
        %v1778 = vadd.f32 %v1728, %v1775
        %v1779 = vadd.f32 %v1731, %v1775
        %v1780 = vadd.f32 %v1734, %v1775
        %v1781 = vadd.f32 %v1737, %v1775
        %v1782 = vadd.f32 %v1740, %v1775
        %v1783 = vadd.f32 %v1743, %v1775
        %v1784 = vadd.f32 %v1746, %v1775
        %v1785 = vadd.f32 %v1749, %v1775
        %v1786 = vadd.f32 %v1752, %v1775
        %v1787 = vadd.f32 %v1755, %v1775
        %v1788 = vadd.f32 %v1758, %v1775
        %v1789 = vadd.f32 %v1761, %v1775
        %v1790 = vadd.f32 %v1764, %v1775
        %v1791 = vadd.f32 %v1767, %v1775
        %v1792 = vadd.f32 %v1770, %v1775
        %v1793 = vmul.f32 %v1777, %v698
        %v1794 = vmul.f32 %v1778, %v703
        %v1795 = vmul.f32 %v1779, %v708
        %v1796 = vmul.f32 %v1780, %v713
        %v1797 = vmul.f32 %v1781, %v718
        %v1798 = vmul.f32 %v1782, %v723
        %v1799 = vmul.f32 %v1783, %v728
        %v1800 = vmul.f32 %v1784, %v733
        %v1801 = vmul.f32 %v1785, %v738
        %v1802 = vmul.f32 %v1786, %v743
        %v1803 = vmul.f32 %v1787, %v748
        %v1804 = vmul.f32 %v1788, %v753
        %v1805 = vmul.f32 %v1789, %v758
        %v1806 = vmul.f32 %v1790, %v763
        %v1807 = vmul.f32 %v1791, %v768
        %v1808 = vmul.f32 %v1792, %v773
        %s1809 = scalar_lea.vmem %s7, 2
        %v1810 = vld [vmem:[%s1809] sm:$0x1]
        %s1811 = scalar_lea.vmem %s8, 2
        %v1812 = vld [vmem:[%s1811] sm:$0x1]
        %v1813 = vadd.f32 %v1793, %v1794
        %v1814 = vrot.slane %v1813, 4
        %v1815 = vadd.f32 %v1813, %v1814
        %v1816 = vrot.slane %v1815, 2
        %v1817 = vadd.f32 %v1815, %v1816
        %v1818 = vrot.slane %v1817, 1
        %v1819 = vadd.f32 %v1817, %v1818
        %v1820 = vadd.f32 %v1795, %v1796
        %v1821 = vrot.slane %v1820, 4
        %v1822 = vadd.f32 %v1820, %v1821
        %v1823 = vrot.slane %v1822, 2
        %v1824 = vadd.f32 %v1822, %v1823
        %v1825 = vrot.slane %v1824, 1
        %v1826 = vadd.f32 %v1824, %v1825
        %v1827 = vadd.f32 %v1797, %v1798
        %v1828 = vrot.slane %v1827, 4
        %v1829 = vadd.f32 %v1827, %v1828
        %v1830 = vrot.slane %v1829, 2
        %v1831 = vadd.f32 %v1829, %v1830
        %v1832 = vrot.slane %v1831, 1
        %v1833 = vadd.f32 %v1831, %v1832
        %v1834 = vadd.f32 %v1799, %v1800
        %v1835 = vrot.slane %v1834, 4
        %v1836 = vadd.f32 %v1834, %v1835
        %v1837 = vrot.slane %v1836, 2
        %v1838 = vadd.f32 %v1836, %v1837
        %v1839 = vrot.slane %v1838, 1
        %v1840 = vadd.f32 %v1838, %v1839
        %v1841 = vadd.f32 %v1801, %v1802
        %v1842 = vrot.slane %v1841, 4
        %v1843 = vadd.f32 %v1841, %v1842
        %v1844 = vrot.slane %v1843, 2
        %v1845 = vadd.f32 %v1843, %v1844
        %v1846 = vrot.slane %v1845, 1
        %v1847 = vadd.f32 %v1845, %v1846
        %v1848 = vadd.f32 %v1803, %v1804
        %v1849 = vrot.slane %v1848, 4
        %v1850 = vadd.f32 %v1848, %v1849
        %v1851 = vrot.slane %v1850, 2
        %v1852 = vadd.f32 %v1850, %v1851
        %v1853 = vrot.slane %v1852, 1
        %v1854 = vadd.f32 %v1852, %v1853
        %v1855 = vadd.f32 %v1805, %v1806
        %v1856 = vrot.slane %v1855, 4
        %v1857 = vadd.f32 %v1855, %v1856
        %v1858 = vrot.slane %v1857, 2
        %v1859 = vadd.f32 %v1857, %v1858
        %v1860 = vrot.slane %v1859, 1
        %v1861 = vadd.f32 %v1859, %v1860
        %v1862 = vadd.f32 %v1807, %v1808
        %v1863 = vrot.slane %v1862, 4
        %v1864 = vadd.f32 %v1862, %v1863
        %v1865 = vrot.slane %v1864, 2
        %v1866 = vadd.f32 %v1864, %v1865
        %v1867 = vrot.slane %v1866, 1
        %v1868 = vadd.f32 %v1866, %v1867
        %v1869 = vmul.f32 %v1793, %v1793
        %v1870 = vmul.f32 %v1794, %v1794
        %v1871 = vmul.f32 %v1795, %v1795
        %v1872 = vmul.f32 %v1796, %v1796
        %v1873 = vmul.f32 %v1797, %v1797
        %v1874 = vmul.f32 %v1798, %v1798
        %v1875 = vmul.f32 %v1799, %v1799
        %v1876 = vmul.f32 %v1800, %v1800
        %v1877 = vmul.f32 %v1801, %v1801
        %v1878 = vmul.f32 %v1802, %v1802
        %v1879 = vmul.f32 %v1803, %v1803
        %v1880 = vmul.f32 %v1804, %v1804
        %v1881 = vmul.f32 %v1805, %v1805
        %v1882 = vmul.f32 %v1806, %v1806
        %v1883 = vmul.f32 %v1807, %v1807
        %v1884 = vmul.f32 %v1808, %v1808
        %v1885 = vadd.f32 %v1869, %v1870
        %v1886 = vrot.slane %v1885, 4
        %v1887 = vadd.f32 %v1885, %v1886
        %v1888 = vrot.slane %v1887, 2
        %v1889 = vadd.f32 %v1887, %v1888
        %v1890 = vrot.slane %v1889, 1
        %v1891 = vadd.f32 %v1889, %v1890
        %v1892 = vadd.f32 %v1871, %v1872
        %v1893 = vrot.slane %v1892, 4
        %v1894 = vadd.f32 %v1892, %v1893
        %v1895 = vrot.slane %v1894, 2
        %v1896 = vadd.f32 %v1894, %v1895
        %v1897 = vrot.slane %v1896, 1
        %v1898 = vadd.f32 %v1896, %v1897
        %v1899 = vadd.f32 %v1873, %v1874
        %v1900 = vrot.slane %v1899, 4
        %v1901 = vadd.f32 %v1899, %v1900
        %v1902 = vrot.slane %v1901, 2
        %v1903 = vadd.f32 %v1901, %v1902
        %v1904 = vrot.slane %v1903, 1
        %v1905 = vadd.f32 %v1903, %v1904
        %v1906 = vadd.f32 %v1875, %v1876
        %v1907 = vrot.slane %v1906, 4
        %v1908 = vadd.f32 %v1906, %v1907
        %v1909 = vrot.slane %v1908, 2
        %v1910 = vadd.f32 %v1908, %v1909
        %v1911 = vrot.slane %v1910, 1
        %v1912 = vadd.f32 %v1910, %v1911
        %v1913 = vadd.f32 %v1877, %v1878
        %v1914 = vrot.slane %v1913, 4
        %v1915 = vadd.f32 %v1913, %v1914
        %v1916 = vrot.slane %v1915, 2
        %v1917 = vadd.f32 %v1915, %v1916
        %v1918 = vrot.slane %v1917, 1
        %v1919 = vadd.f32 %v1917, %v1918
        %v1920 = vadd.f32 %v1879, %v1880
        %v1921 = vrot.slane %v1920, 4
        %v1922 = vadd.f32 %v1920, %v1921
        %v1923 = vrot.slane %v1922, 2
        %v1924 = vadd.f32 %v1922, %v1923
        %v1925 = vrot.slane %v1924, 1
        %v1926 = vadd.f32 %v1924, %v1925
        %v1927 = vadd.f32 %v1881, %v1882
        %v1928 = vrot.slane %v1927, 4
        %v1929 = vadd.f32 %v1927, %v1928
        %v1930 = vrot.slane %v1929, 2
        %v1931 = vadd.f32 %v1929, %v1930
        %v1932 = vrot.slane %v1931, 1
        %v1933 = vadd.f32 %v1931, %v1932
        %v1934 = vadd.f32 %v1883, %v1884
        %v1935 = vrot.slane %v1934, 4
        %v1936 = vadd.f32 %v1934, %v1935
        %v1937 = vrot.slane %v1936, 2
        %v1938 = vadd.f32 %v1936, %v1937
        %v1939 = vrot.slane %v1938, 1
        %v1940 = vadd.f32 %v1938, %v1939
        %v1941 = vmul.f32 %v1819, %v925
        %v1942 = vmul.f32 %v1826, %v930
        %v1943 = vmul.f32 %v1833, %v935
        %v1944 = vmul.f32 %v1840, %v940
        %v1945 = vmul.f32 %v1847, %v945
        %v1946 = vmul.f32 %v1854, %v950
        %v1947 = vmul.f32 %v1861, %v955
        %v1948 = vmul.f32 %v1868, %v960
        %v1949 = vmul.f32 %v1891, %v925
        %v1950 = vmul.f32 %v1898, %v930
        %v1951 = vmul.f32 %v1905, %v935
        %v1952 = vmul.f32 %v1912, %v940
        %v1953 = vmul.f32 %v1919, %v945
        %v1954 = vmul.f32 %v1926, %v950
        %v1955 = vmul.f32 %v1933, %v955
        %v1956 = vmul.f32 %v1940, %v960
        %v1957 = vmul.f32 %v1941, %v1941
        %v1958 = vmul.f32 %v1942, %v1942
        %v1959 = vmul.f32 %v1943, %v1943
        %v1960 = vmul.f32 %v1944, %v1944
        %v1961 = vmul.f32 %v1945, %v1945
        %v1962 = vmul.f32 %v1946, %v1946
        %v1963 = vmul.f32 %v1947, %v1947
        %v1964 = vmul.f32 %v1948, %v1948
        %v1965 = vsub.f32 %v1949, %v1957
        %v1966 = vsub.f32 %v1950, %v1958
        %v1967 = vsub.f32 %v1951, %v1959
        %v1968 = vsub.f32 %v1952, %v1960
        %v1969 = vsub.f32 %v1953, %v1961
        %v1970 = vsub.f32 %v1954, %v1962
        %v1971 = vsub.f32 %v1955, %v1963
        %v1972 = vsub.f32 %v1956, %v1964
        %v1973 = vadd.f32 %v1965, 1e-05
        %v1974 = vadd.f32 %v1966, 1e-05
        %v1975 = vadd.f32 %v1967, 1e-05
        %v1976 = vadd.f32 %v1968, 1e-05
        %v1977 = vadd.f32 %v1969, 1e-05
        %v1978 = vadd.f32 %v1970, 1e-05
        %v1979 = vadd.f32 %v1971, 1e-05
        %v1980 = vadd.f32 %v1972, 1e-05
        %v1981 = vrsqrt.pop %v1973
        %v1982 = vmul.f32 %v1981, %v1973
        %v1983 = vmul.f32 %v1982, %v1981
        %v1984 = vmul.f32 0.5, %v1983
        %v1985 = vsub.f32 1.5, %v1984
        %v1986 = vmul.f32 %v1981, %v1985
        %vm1987 = vweird.f32 %v1973
        %vm1988 = vweird.f32 %v1981
        %vm1989 = vmor %vm1987, %vm1988
        %v1990 = vsel %vm1989, %v1981, %v1986
        %v1991 = vrsqrt.pop %v1974
        %v1992 = vmul.f32 %v1991, %v1974
        %v1993 = vmul.f32 %v1992, %v1991
        %v1994 = vmul.f32 0.5, %v1993
        %v1995 = vsub.f32 1.5, %v1994
        %v1996 = vmul.f32 %v1991, %v1995
        %vm1997 = vweird.f32 %v1974
        %vm1998 = vweird.f32 %v1991
        %vm1999 = vmor %vm1997, %vm1998
        %v2000 = vsel %vm1999, %v1991, %v1996
        %v2001 = vrsqrt.pop %v1975
        %v2002 = vmul.f32 %v2001, %v1975
        %v2003 = vmul.f32 %v2002, %v2001
        %v2004 = vmul.f32 0.5, %v2003
        %v2005 = vsub.f32 1.5, %v2004
        %v2006 = vmul.f32 %v2001, %v2005
        %vm2007 = vweird.f32 %v1975
        %vm2008 = vweird.f32 %v2001
        %vm2009 = vmor %vm2007, %vm2008
        %v2010 = vsel %vm2009, %v2001, %v2006
        %v2011 = vrsqrt.pop %v1976
        %v2012 = vmul.f32 %v2011, %v1976
        %v2013 = vmul.f32 %v2012, %v2011
        %v2014 = vmul.f32 0.5, %v2013
        %v2015 = vsub.f32 1.5, %v2014
        %v2016 = vmul.f32 %v2011, %v2015
        %vm2017 = vweird.f32 %v1976
        %vm2018 = vweird.f32 %v2011
        %vm2019 = vmor %vm2017, %vm2018
        %v2020 = vsel %vm2019, %v2011, %v2016
        %v2021 = vrsqrt.pop %v1977
        %v2022 = vmul.f32 %v2021, %v1977
        %v2023 = vmul.f32 %v2022, %v2021
        %v2024 = vmul.f32 0.5, %v2023
        %v2025 = vsub.f32 1.5, %v2024
        %v2026 = vmul.f32 %v2021, %v2025
        %vm2027 = vweird.f32 %v1977
        %vm2028 = vweird.f32 %v2021
        %vm2029 = vmor %vm2027, %vm2028
        %v2030 = vsel %vm2029, %v2021, %v2026
        %v2031 = vrsqrt.pop %v1978
        %v2032 = vmul.f32 %v2031, %v1978
        %v2033 = vmul.f32 %v2032, %v2031
        %v2034 = vmul.f32 0.5, %v2033
        %v2035 = vsub.f32 1.5, %v2034
        %v2036 = vmul.f32 %v2031, %v2035
        %vm2037 = vweird.f32 %v1978
        %vm2038 = vweird.f32 %v2031
        %vm2039 = vmor %vm2037, %vm2038
        %v2040 = vsel %vm2039, %v2031, %v2036
        %v2041 = vrsqrt.pop %v1979
        %v2042 = vmul.f32 %v2041, %v1979
        %v2043 = vmul.f32 %v2042, %v2041
        %v2044 = vmul.f32 0.5, %v2043
        %v2045 = vsub.f32 1.5, %v2044
        %v2046 = vmul.f32 %v2041, %v2045
        %vm2047 = vweird.f32 %v1979
        %vm2048 = vweird.f32 %v2041
        %vm2049 = vmor %vm2047, %vm2048
        %v2050 = vsel %vm2049, %v2041, %v2046
        %v2051 = vrsqrt.pop %v1980
        %v2052 = vmul.f32 %v2051, %v1980
        %v2053 = vmul.f32 %v2052, %v2051
        %v2054 = vmul.f32 0.5, %v2053
        %v2055 = vsub.f32 1.5, %v2054
        %v2056 = vmul.f32 %v2051, %v2055
        %vm2057 = vweird.f32 %v1980
        %vm2058 = vweird.f32 %v2051
        %vm2059 = vmor %vm2057, %vm2058
        %v2060 = vsel %vm2059, %v2051, %v2056
        %v2061 = vmul.f32 %v1810, %v1990
        %v2062 = vmul.f32 %v1810, %v2000
        %v2063 = vmul.f32 %v1810, %v2010
        %v2064 = vmul.f32 %v1810, %v2020
        %v2065 = vmul.f32 %v1810, %v2030
        %v2066 = vmul.f32 %v1810, %v2040
        %v2067 = vmul.f32 %v1810, %v2050
        %v2068 = vmul.f32 %v1810, %v2060
        %v2069 = vmul.f32 %v1941, %v2061
        %v2070 = vmul.f32 %v1942, %v2062
        %v2071 = vmul.f32 %v1943, %v2063
        %v2072 = vmul.f32 %v1944, %v2064
        %v2073 = vmul.f32 %v1945, %v2065
        %v2074 = vmul.f32 %v1946, %v2066
        %v2075 = vmul.f32 %v1947, %v2067
        %v2076 = vmul.f32 %v1948, %v2068
        %v2077 = vsub.f32 %v1812, %v2069
        %v2078 = vsub.f32 %v1812, %v2070
        %v2079 = vsub.f32 %v1812, %v2071
        %v2080 = vsub.f32 %v1812, %v2072
        %v2081 = vsub.f32 %v1812, %v2073
        %v2082 = vsub.f32 %v1812, %v2074
        %v2083 = vsub.f32 %v1812, %v2075
        %v2084 = vsub.f32 %v1812, %v2076
        %v2093 = vperm.slane %v2061, 0
        %v2094 = vperm.slane %v2062, 0
        %v2095 = vperm.slane %v2063, 0
        %v2096 = vperm.slane %v2064, 0
        %v2097 = vperm.slane %v2065, 0
        %v2098 = vperm.slane %v2066, 0
        %v2099 = vperm.slane %v2067, 0
        %v2100 = vperm.slane %v2068, 0
        %v2109 = vmul.f32 %v1793, %v2093
        %v2110 = vmul.f32 %v1794, %v2093
        %v2111 = vmul.f32 %v1795, %v2094
        %v2112 = vmul.f32 %v1796, %v2094
        %v2113 = vmul.f32 %v1797, %v2095
        %v2114 = vmul.f32 %v1798, %v2095
        %v2115 = vmul.f32 %v1799, %v2096
        %v2116 = vmul.f32 %v1800, %v2096
        %v2117 = vmul.f32 %v1801, %v2097
        %v2118 = vmul.f32 %v1802, %v2097
        %v2119 = vmul.f32 %v1803, %v2098
        %v2120 = vmul.f32 %v1804, %v2098
        %v2121 = vmul.f32 %v1805, %v2099
        %v2122 = vmul.f32 %v1806, %v2099
        %v2123 = vmul.f32 %v1807, %v2100
        %v2124 = vmul.f32 %v1808, %v2100
        %v2133 = vperm.slane %v2077, 0
        %v2134 = vperm.slane %v2078, 0
        %v2135 = vperm.slane %v2079, 0
        %v2136 = vperm.slane %v2080, 0
        %v2137 = vperm.slane %v2081, 0
        %v2138 = vperm.slane %v2082, 0
        %v2139 = vperm.slane %v2083, 0
        %v2140 = vperm.slane %v2084, 0
        %v2149 = vadd.f32 %v2109, %v2133
        %v2150 = vadd.f32 %v2110, %v2133
        %v2151 = vadd.f32 %v2111, %v2134
        %v2152 = vadd.f32 %v2112, %v2134
        %v2153 = vadd.f32 %v2113, %v2135
        %v2154 = vadd.f32 %v2114, %v2135
        %v2155 = vadd.f32 %v2115, %v2136
        %v2156 = vadd.f32 %v2116, %v2136
        %v2157 = vadd.f32 %v2117, %v2137
        %v2158 = vadd.f32 %v2118, %v2137
        %v2159 = vadd.f32 %v2119, %v2138
        %v2160 = vadd.f32 %v2120, %v2138
        %v2161 = vadd.f32 %v2121, %v2139
        %v2162 = vadd.f32 %v2122, %v2139
        %v2163 = vadd.f32 %v2123, %v2140
        %v2164 = vadd.f32 %v2124, %v2140
        %v2165 = vmax.f32 %v2149, 0.0
        %v2166 = vmax.f32 %v2150, 0.0
        %v2167 = vmax.f32 %v2151, 0.0
        %v2168 = vmax.f32 %v2152, 0.0
        %v2169 = vmax.f32 %v2153, 0.0
        %v2170 = vmax.f32 %v2154, 0.0
        %v2171 = vmax.f32 %v2155, 0.0
        %v2172 = vmax.f32 %v2156, 0.0
        %v2173 = vmax.f32 %v2157, 0.0
        %v2174 = vmax.f32 %v2158, 0.0
        %v2175 = vmax.f32 %v2159, 0.0
        %v2176 = vmax.f32 %v2160, 0.0
        %v2177 = vmax.f32 %v2161, 0.0
        %v2178 = vmax.f32 %v2162, 0.0
        %v2179 = vmax.f32 %v2163, 0.0
        %v2180 = vmax.f32 %v2164, 0.0
        %v2181 = vlaneseq
        %v2182 = vshrl.u32 %v2181, 7
        %v2183 = vadd.s32 %v2182, 8
        %v2184 = vcvt.s32.f32 %v2182
        %v2185 = vcvt.s32.f32 %v2183
        %v2187 = vrot.slane %v538, 1
        %v2188 = vrot.slane %v538, 2
        %v2189 = vrot.slane %v538, 3
        %v2190 = vrot.slane %v538, 4
        %v2191 = vrot.slane %v538, 5
        %v2192 = vrot.slane %v538, 6
        %v2193 = vrot.slane %v538, 7
        %v2194 = vperm.slane %v538, 0
        %v2195 = vperm.slane %v2187, 0
        %v2196 = vperm.slane %v2188, 0
        %v2197 = vperm.slane %v2189, 0
        %v2198 = vperm.slane %v2190, 0
        %v2199 = vperm.slane %v2191, 0
        %v2200 = vperm.slane %v2192, 0
        %v2201 = vperm.slane %v2193, 0
        %vm2210 = vcmp.lt.f32.partialorder %v2184, %v2194
        %vm2211 = vcmp.lt.f32.partialorder %v2185, %v2194
        %vm2212 = vcmp.lt.f32.partialorder %v2184, %v2195
        %vm2213 = vcmp.lt.f32.partialorder %v2185, %v2195
        %vm2214 = vcmp.lt.f32.partialorder %v2184, %v2196
        %vm2215 = vcmp.lt.f32.partialorder %v2185, %v2196
        %vm2216 = vcmp.lt.f32.partialorder %v2184, %v2197
        %vm2217 = vcmp.lt.f32.partialorder %v2185, %v2197
        %vm2218 = vcmp.lt.f32.partialorder %v2184, %v2198
        %vm2219 = vcmp.lt.f32.partialorder %v2185, %v2198
        %vm2220 = vcmp.lt.f32.partialorder %v2184, %v2199
        %vm2221 = vcmp.lt.f32.partialorder %v2185, %v2199
        %vm2222 = vcmp.lt.f32.partialorder %v2184, %v2200
        %vm2223 = vcmp.lt.f32.partialorder %v2185, %v2200
        %vm2224 = vcmp.lt.f32.partialorder %v2184, %v2201
        %vm2225 = vcmp.lt.f32.partialorder %v2185, %v2201
        %v2226 = vsel %vm2210, 1, 0
        %v2227 = vsel %vm2211, 1, 0
        %v2228 = vsel %vm2212, 1, 0
        %v2229 = vsel %vm2213, 1, 0
        %v2230 = vsel %vm2214, 1, 0
        %v2231 = vsel %vm2215, 1, 0
        %v2232 = vsel %vm2216, 1, 0
        %v2233 = vsel %vm2217, 1, 0
        %v2234 = vsel %vm2218, 1, 0
        %v2235 = vsel %vm2219, 1, 0
        %v2236 = vsel %vm2220, 1, 0
        %v2237 = vsel %vm2221, 1, 0
        %v2238 = vsel %vm2222, 1, 0
        %v2239 = vsel %vm2223, 1, 0
        %v2240 = vsel %vm2224, 1, 0
        %v2241 = vsel %vm2225, 1, 0
        %v2242 = vcvt.s32.f32 %v2226
        %v2243 = vcvt.s32.f32 %v2227
        %v2244 = vcvt.s32.f32 %v2228
        %v2245 = vcvt.s32.f32 %v2229
        %v2246 = vcvt.s32.f32 %v2230
        %v2247 = vcvt.s32.f32 %v2231
        %v2248 = vcvt.s32.f32 %v2232
        %v2249 = vcvt.s32.f32 %v2233
        %v2250 = vcvt.s32.f32 %v2234
        %v2251 = vcvt.s32.f32 %v2235
        %v2252 = vcvt.s32.f32 %v2236
        %v2253 = vcvt.s32.f32 %v2237
        %v2254 = vcvt.s32.f32 %v2238
        %v2255 = vcvt.s32.f32 %v2239
        %v2256 = vcvt.s32.f32 %v2240
        %v2257 = vcvt.s32.f32 %v2241
        %2259 = vset.pattern.permute.xlu0 0
        %2260 = vperm.xlu0 %2259, %v2242
        %v2261 = vpop.permute.xlu0 %2260
        %2264 = vset.pattern.permute.xlu0 0
        %2265 = vperm.xlu0 %2264, %v2243
        %v2266 = vpop.permute.xlu0 %2265
        %2269 = vset.pattern.permute.xlu0 0
        %2270 = vperm.xlu0 %2269, %v2244
        %v2271 = vpop.permute.xlu0 %2270
        %2274 = vset.pattern.permute.xlu0 0
        %2275 = vperm.xlu0 %2274, %v2245
        %v2276 = vpop.permute.xlu0 %2275
        %2279 = vset.pattern.permute.xlu0 0
        %2280 = vperm.xlu0 %2279, %v2246
        %v2281 = vpop.permute.xlu0 %2280
        %2284 = vset.pattern.permute.xlu0 0
        %2285 = vperm.xlu0 %2284, %v2247
        %v2286 = vpop.permute.xlu0 %2285
        %2289 = vset.pattern.permute.xlu0 0
        %2290 = vperm.xlu0 %2289, %v2248
        %v2291 = vpop.permute.xlu0 %2290
        %2294 = vset.pattern.permute.xlu0 0
        %2295 = vperm.xlu0 %2294, %v2249
        %v2296 = vpop.permute.xlu0 %2295
        %2299 = vset.pattern.permute.xlu0 0
        %2300 = vperm.xlu0 %2299, %v2250
        %v2301 = vpop.permute.xlu0 %2300
        %2304 = vset.pattern.permute.xlu0 0
        %2305 = vperm.xlu0 %2304, %v2251
        %v2306 = vpop.permute.xlu0 %2305
        %2309 = vset.pattern.permute.xlu0 0
        %2310 = vperm.xlu0 %2309, %v2252
        %v2311 = vpop.permute.xlu0 %2310
        %2314 = vset.pattern.permute.xlu0 0
        %2315 = vperm.xlu0 %2314, %v2253
        %v2316 = vpop.permute.xlu0 %2315
        %2319 = vset.pattern.permute.xlu0 0
        %2320 = vperm.xlu0 %2319, %v2254
        %v2321 = vpop.permute.xlu0 %2320
        %2324 = vset.pattern.permute.xlu0 0
        %2325 = vperm.xlu0 %2324, %v2255
        %v2326 = vpop.permute.xlu0 %2325
        %2329 = vset.pattern.permute.xlu0 0
        %2330 = vperm.xlu0 %2329, %v2256
        %v2331 = vpop.permute.xlu0 %2330
        %2334 = vset.pattern.permute.xlu0 0
        %2335 = vperm.xlu0 %2334, %v2257
        %v2336 = vpop.permute.xlu0 %2335
        %v2338 = vmul.f32 %v2165, %v2261
        %v2339 = vmul.f32 %v2166, %v2266
        %v2340 = vmul.f32 %v2167, %v2271
        %v2341 = vmul.f32 %v2168, %v2276
        %v2342 = vmul.f32 %v2169, %v2281
        %v2343 = vmul.f32 %v2170, %v2286
        %v2344 = vmul.f32 %v2171, %v2291
        %v2345 = vmul.f32 %v2172, %v2296
        %v2346 = vmul.f32 %v2173, %v2301
        %v2347 = vmul.f32 %v2174, %v2306
        %v2348 = vmul.f32 %v2175, %v2311
        %v2349 = vmul.f32 %v2176, %v2316
        %v2350 = vmul.f32 %v2177, %v2321
        %v2351 = vmul.f32 %v2178, %v2326
        %v2352 = vmul.f32 %v2179, %v2331
        %v2353 = vmul.f32 %v2180, %v2336
        %v2354 = vadd.f32 %v2338, %v2339
        %v2355 = vrot.slane %v2354, 4
        %v2356 = vadd.f32 %v2354, %v2355
        %v2357 = vrot.slane %v2356, 2
        %v2358 = vadd.f32 %v2356, %v2357
        %v2359 = vrot.slane %v2358, 1
        %v2360 = vadd.f32 %v2358, %v2359
        %v2361 = vadd.f32 %v2340, %v2341
        %v2362 = vrot.slane %v2361, 4
        %v2363 = vadd.f32 %v2361, %v2362
        %v2364 = vrot.slane %v2363, 2
        %v2365 = vadd.f32 %v2363, %v2364
        %v2366 = vrot.slane %v2365, 1
        %v2367 = vadd.f32 %v2365, %v2366
        %v2368 = vadd.f32 %v2342, %v2343
        %v2369 = vrot.slane %v2368, 4
        %v2370 = vadd.f32 %v2368, %v2369
        %v2371 = vrot.slane %v2370, 2
        %v2372 = vadd.f32 %v2370, %v2371
        %v2373 = vrot.slane %v2372, 1
        %v2374 = vadd.f32 %v2372, %v2373
        %v2375 = vadd.f32 %v2344, %v2345
        %v2376 = vrot.slane %v2375, 4
        %v2377 = vadd.f32 %v2375, %v2376
        %v2378 = vrot.slane %v2377, 2
        %v2379 = vadd.f32 %v2377, %v2378
        %v2380 = vrot.slane %v2379, 1
        %v2381 = vadd.f32 %v2379, %v2380
        %v2382 = vadd.f32 %v2346, %v2347
        %v2383 = vrot.slane %v2382, 4
        %v2384 = vadd.f32 %v2382, %v2383
        %v2385 = vrot.slane %v2384, 2
        %v2386 = vadd.f32 %v2384, %v2385
        %v2387 = vrot.slane %v2386, 1
        %v2388 = vadd.f32 %v2386, %v2387
        %v2389 = vadd.f32 %v2348, %v2349
        %v2390 = vrot.slane %v2389, 4
        %v2391 = vadd.f32 %v2389, %v2390
        %v2392 = vrot.slane %v2391, 2
        %v2393 = vadd.f32 %v2391, %v2392
        %v2394 = vrot.slane %v2393, 1
        %v2395 = vadd.f32 %v2393, %v2394
        %v2396 = vadd.f32 %v2350, %v2351
        %v2397 = vrot.slane %v2396, 4
        %v2398 = vadd.f32 %v2396, %v2397
        %v2399 = vrot.slane %v2398, 2
        %v2400 = vadd.f32 %v2398, %v2399
        %v2401 = vrot.slane %v2400, 1
        %v2402 = vadd.f32 %v2400, %v2401
        %v2403 = vadd.f32 %v2352, %v2353
        %v2404 = vrot.slane %v2403, 4
        %v2405 = vadd.f32 %v2403, %v2404
        %v2406 = vrot.slane %v2405, 2
        %v2407 = vadd.f32 %v2405, %v2406
        %v2408 = vrot.slane %v2407, 1
        %v2409 = vadd.f32 %v2407, %v2408
        %v2410 = vrot.slane %v923, 1
        %v2411 = vrot.slane %v923, 2
        %v2412 = vrot.slane %v923, 3
        %v2413 = vrot.slane %v923, 4
        %v2414 = vrot.slane %v923, 5
        %v2415 = vrot.slane %v923, 6
        %v2416 = vrot.slane %v923, 7
        %v2424 = vmul.f32 %v2360, %v923
        %v2425 = vmul.f32 %v2367, %v2410
        %v2426 = vmul.f32 %v2374, %v2411
        %v2427 = vmul.f32 %v2381, %v2412
        %v2428 = vmul.f32 %v2388, %v2413
        %v2429 = vmul.f32 %v2395, %v2414
        %v2430 = vmul.f32 %v2402, %v2415
        %v2431 = vmul.f32 %v2409, %v2416
        %v2432 = vmax.f32 %v2424, 0.0
        %v2433 = vmax.f32 %v2425, 0.0
        %v2434 = vmax.f32 %v2426, 0.0
        %v2435 = vmax.f32 %v2427, 0.0
        %v2436 = vmax.f32 %v2428, 0.0
        %v2437 = vmax.f32 %v2429, 0.0
        %v2438 = vmax.f32 %v2430, 0.0
        %v2439 = vmax.f32 %v2431, 0.0
        %v2440 = vld [vmem:[#allocation8] sm:$0xff]
        %v2441 = vld [vmem:[#allocation8 + $0x8] sm:$0xff]
        %v2442 = vld [vmem:[#allocation8 + $0x10] sm:$0xff]
        %v2443 = vld [vmem:[#allocation8 + $0x18] sm:$0xff]
        %v2444 = vld [vmem:[#allocation8 + $0x20] sm:$0xff]
        %v2445 = vld [vmem:[#allocation8 + $0x28] sm:$0xff]
        %v2446 = vld [vmem:[#allocation8 + $0x30] sm:$0xff]
        %v2447 = vld [vmem:[#allocation8 + $0x38] sm:$0xff]
        %v2448 = vld [vmem:[#allocation8 + $0x40] sm:$0xff]
        %v2449 = vld [vmem:[#allocation8 + $0x48] sm:$0xff]
        %v2450 = vld [vmem:[#allocation8 + $0x50] sm:$0xff]
        %v2451 = vld [vmem:[#allocation8 + $0x58] sm:$0xff]
        %v2452 = vld [vmem:[#allocation8 + $0x60] sm:$0xff]
        %v2453 = vld [vmem:[#allocation8 + $0x68] sm:$0xff]
        %v2454 = vld [vmem:[#allocation8 + $0x70] sm:$0xff]
        %v2455 = vld [vmem:[#allocation8 + $0x78] sm:$0xff]
        %v2456 = vld [vmem:[%s10] sm:$0x1]
        %v2458 = vperm.slane %v2456, 0
        %v2468 = vrot.slane %v2433, 7
        %vm2469 = vcmask 1041409
        %v2470 = vsel %vm2469, %v2468, %v2432
        %v2471 = vrot.slane %v2434, 6
        %vm2472 = vcmask 1042434
        %v2473 = vsel %vm2472, %v2471, %v2470
        %v2474 = vrot.slane %v2435, 5
        %vm2475 = vcmask 1043459
        %v2476 = vsel %vm2475, %v2474, %v2473
        %v2477 = vrot.slane %v2436, 4
        %vm2478 = vcmask 1044484
        %v2479 = vsel %vm2478, %v2477, %v2476
        %v2480 = vrot.slane %v2437, 3
        %vm2481 = vcmask 1045509
        %v2482 = vsel %vm2481, %v2480, %v2479
        %v2483 = vrot.slane %v2438, 2
        %vm2484 = vcmask 1046534
        %v2485 = vsel %vm2484, %v2483, %v2482
        %v2486 = vrot.slane %v2439, 1
        %vm2487 = vcmask 1047559
        %v2488 = vsel %vm2487, %v2486, %v2485
        %2490 = vmatpush.msra.mxu0 %v2455
        %2491 = vmatpush.msra.mxu0 %v2454
        %2492 = vmatpush.msra.mxu0 %v2453
        %2493 = vmatpush.msra.mxu0 %v2452
        %2494 = vmatpush.msra.mxu0 %v2451
        %2495 = vmatpush.msra.mxu0 %v2450
        %2496 = vmatpush.msra.mxu0 %v2449
        %2497 = vmatpush.msra.mxu0 %v2448
        %2498 = vmatpush.msra.mxu0 %v2447
        %2499 = vmatpush.msra.mxu0 %v2446
        %2500 = vmatpush.msra.mxu0 %v2445
        %2501 = vmatpush.msra.mxu0 %v2444
        %2502 = vmatpush.msra.mxu0 %v2443
        %2503 = vmatpush.msra.mxu0 %v2442
        %2504 = vmatpush.msra.mxu0 %v2441
        %2505 = vmatpush.msra.mxu0 %v2440
        %2506 = vmatmul.f32.gmra.mxu0 %v2488
        %v2507 = vpop.f32.mrf.mxu0
        %v2508 = vadd.f32 %v2458, %v2507
        %2509 = vdwg.mxu0
        %v2510 = vmax.f32 %v2508, 0.0
        %v2511 = vld [vmem:[%s11] sm:$0x1]
        %v2513 = vperm.slane %v2511, 0
        %v2515 = vmul.f32 %v2510, %v2513
        %2516 = vadd.xlane.f32.xlu0 %v2515
        %v2517 = vpop.xlane.xlu0 %2516
        %v2518 = vld [vmem:[#allocation2] sm:$0x1]
        %v2520 = vperm.slane %v2518, 0
        %v2522 = vadd.f32 %v2517, %v2520
        %2524 = vset.pattern.permute.xlu0 0
        %2525 = vperm.xlu0 %2524, %v2522
        %v2526 = vpop.permute.xlu0 %2525
        %2528 = vst [vmem:[%s519] sm:$0xff] %v2526
        %s2529 = sand.u32 %s327, 1
        %s2530 = scalar_lea.sflag [#allocation5], %s2529
        %s2531 = sand.u32 %s327, 1
        %s2532 = smul.addr %s2531, 8
        %s2533 = scalar_lea.vmem [#allocation9], %s2532
        // Predicated region
        $region85: #{tpu_custom_call.1} parent=71 // pred_check
          %p2534 = pneg %p337
        $region86: #{tpu_custom_call.1} parent=71 // pred_check_branch
          %2536 = sbr.rel (%p2534) target = $region88
        $region87: #{tpu_custom_call.1} parent=71 // pred_region
          %2538 = vsyncadd %s2530, 0
          %s2539 = smul.addr %s31, 8
          %s2540 = scalar_lea.hbm %s13, %s2539
          %s2542 = sshll.u32 %s2533, 4
          %s2543 = int_to_ptr.vmem [resolvable:$true] %s2542
          %s2544 = sshll.u32 %s2540, 4
          %s2545 = int_to_ptr.hbm [resolvable:$true] %s2544
          %2547 = dma.vmem_to_hbm [thread:$0]  %s2543, 128, %s2545, %s2530
        $region88: #{tpu_custom_call.1} parent=71 // pred_fallthru
          _
      $region72: #{tpu_custom_call.1} parent=5 // pred_fallthru
        _
      %p2548 = scmp.le.s32.totalorder 2, %s26
      // Predicated region
      $region89: #{tpu_custom_call.1} parent=5 // pred_check
        %p2549 = pneg %p2548
      $region90: #{tpu_custom_call.1} parent=5 // pred_check_branch
        %2551 = sbr.rel (%p2549) target = $region92
      $region91: #{tpu_custom_call.1} parent=5 // pred_region
        %s2552 = ssub.s32 %s26, 2
        // Predicated region
        $region93: #{tpu_custom_call.1} parent=91 // pred_check
          %p2553 = pneg %p343
        $region94: #{tpu_custom_call.1} parent=91 // pred_check_branch
          %2555 = sbr.rel (%p2553) target = $region96
        $region95: #{tpu_custom_call.1} parent=91 // pred_region
          %s2556 = sand.u32 %s328, 1
          %s2557 = scalar_lea.sflag [#allocation5], %s2556
          %s2558 = sand.u32 %s328, 1
          %s2559 = smul.addr %s2558, 8
          %s2560 = scalar_lea.vmem [#allocation9], %s2559
          %2562 = dma.done %s2557, 128
        $region96: #{tpu_custom_call.1} parent=91 // pred_fallthru
          _
      $region92: #{tpu_custom_call.1} parent=5 // pred_fallthru
        _
    $region6: #{tpu_custom_call.1} parent=1 // loop_footer
      %s30 = sadd.s32 1, %s26
    $region7: #{tpu_custom_call.1} parent=1 // loop_footer_branch
      %25 = sbr.rel target = $region3
    $region8: #{tpu_custom_call.1} parent=1 // loop_exit
      _
    %2563 = vsyncpa [#allocation4], 1
    %s2564 = scalar_lea.sflag [#allocation4], 1
    %2565 = vsyncpa %s2564, 1
    %2566 = vsyncpa [#allocation7], 1
    %2567 = vsyncpa [#allocation5], 1
    %s2568 = scalar_lea.sflag [#allocation5], 1
    %2569 = vsyncpa %s2568, 1

</llo_original>
